<compile_context>
chip_gen: v7x
topology: tpu7x:2x2x1
jax: 0.10.0
libtpu: 0.0.40
codegen_flags: <defaults>
</compile_context>

<pallas_src>
import functools
from typing import NamedTuple

import jax
import jax.numpy as jnp
from jax import lax
from jax.experimental import pallas as pl
from jax.experimental.pallas import tpu as pltpu


def _round_up(x, m):
    return ((x + m - 1) // m) * m


class PackedFFNWeights(NamedTuple):
    """Weights prepared once (bf16, padded, fused/transposed) for the kernel."""
    w13: jax.Array   # (2 * h_pad, D) bf16; slab h = [w1 rows h*th:(h+1)*th ; w3 rows ...]
    w2t: jax.Array   # (h_pad, D) bf16; w2 pre-transposed (w2.T), zero-padded rows
    dim: int
    hidden: int
    h_pad: int
    tile_h: int


def pack_ffn_weights(w1, w2, w3, *, tile_h=512):
    """One-time weight prep (do NOT call per forward pass in production).

    w1, w3: (hidden, dim)  -- PyTorch nn.Linear (out_features, in_features)
    w2    : (dim, hidden)
    """
    H, D = w1.shape
    assert w3.shape == (H, D) and w2.shape == (D, H)

    th = min(_round_up(tile_h, 128), _round_up(H, 128))
    h_pad = _round_up(H, th)

    w1b = w1.astype(jnp.bfloat16)
    w3b = w3.astype(jnp.bfloat16)
    w2tb = jnp.transpose(w2).astype(jnp.bfloat16)   # (H, D)
    if h_pad != H:
        pad = h_pad - H
        w1b = jnp.pad(w1b, ((0, pad), (0, 0)))
        w3b = jnp.pad(w3b, ((0, pad), (0, 0)))
        w2tb = jnp.pad(w2tb, ((0, pad), (0, 0)))

    n_slabs = h_pad // th
    # Interleave per-slab so one contiguous (2*th, D) block per hidden step
    # holds [w1 slab ; w3 slab].
    w13 = jnp.concatenate(
        [w1b.reshape(n_slabs, th, D), w3b.reshape(n_slabs, th, D)], axis=1
    ).reshape(2 * h_pad, D)

    return PackedFFNWeights(w13=w13, w2t=w2tb, dim=D, hidden=H,
                            h_pad=h_pad, tile_h=th)


def _ffn_kernel(x_ref, w13_ref, w2t_ref, o_ref, acc_ref, *, th):
    """One (token-tile, hidden-slab) grid step of the SwiGLU FFN.

    x_ref  : (TM, D)     bf16 token tile (reused for every hidden step)
    w13_ref: (2*TH, D)   bf16 fused w1/w3 slab (rows 0:TH = w1, TH:2TH = w3)
    w2t_ref: (TH, D)     bf16 slab of w2.T (contiguous, native MxK @ KxN)
    o_ref  : (TM, D)     output tile (x dtype)
    acc_ref: (TM, D)     f32 accumulator scratch carried across the H axis
    """
    h = pl.program_id(1)

    @pl.when(h == 0)
    def _():
        acc_ref[...] = jnp.zeros_like(acc_ref)

    x = x_ref[...]
    # x @ W.T: contract the feature axis (last of x, last of weight); the MXU
    # handles trans-B natively, no materialized transpose.
    dn_tb = (((1,), (1,)), ((), ()))
    h13 = lax.dot_general(x, w13_ref[...], dn_tb,
                          preferred_element_type=jnp.float32)  # (TM, 2*TH)

    h1 = h13[:, :th]
    h3 = h13[:, th:]
    # SiLU + gating in f32 on the VPU/EUP; hides under the MXU-bound schedule.
    g = (h1 * jax.nn.sigmoid(h1) * h3).astype(jnp.bfloat16)

    # Partial w2 matmul for this hidden slab (standard (M,K)x(K,N)), f32 acc.
    dn_std = (((1,), (0,)), ((), ()))
    acc_ref[...] += lax.dot_general(g, w2t_ref[...], dn_std,
                                    preferred_element_type=jnp.float32)

    @pl.when(h == pl.num_programs(1) - 1)
    def _():
        o_ref[...] = acc_ref[...].astype(o_ref.dtype)


def feed_forward(x, weights: PackedFFNWeights, *, tile_m=512):
    """SwiGLU FFN forward. x: (batch, seq, dim); weights from pack_ffn_weights.

    tile_m: token tile (MXU M per step). Tuning guidance:
      v6e: 512-1024 (needs ~650 flops/byte vs the weight stream),
      v7x: 384-512 (per-TC roofline ~320 flops/byte; keeps VMEM < 64 MiB),
      v5e: 256-384. Rounded to multiples of 128; auto-halved for tiny inputs
      so the parallel token axis keeps >=2 tiles when possible (megacore).
    """
    B, S, D = x.shape
    assert D == weights.dim
    th = weights.tile_h
    h_pad = weights.h_pad

    tokens = B * S

    # Token tile: multiple of 128 (full MXU rows, bf16 sublane-pack friendly),
    # clamped for tiny inputs.
    tm = _round_up(min(tile_m, _round_up(tokens, 128)), 128)
    # Keep at least 2 token tiles when the input allows it (v7x: 2 TCs/chip).
    while tm > 128 and pl.cdiv(tokens, tm) < 2:
        tm = _round_up(tm // 2, 128)
    tokens_pad = _round_up(tokens, tm)

    xb = x.reshape(tokens, D).astype(jnp.bfloat16)
    if tokens_pad != tokens:
        xb = jnp.pad(xb, ((0, tokens_pad - tokens), (0, 0)))

    # Tokens outer ("parallel" -> megacore sharding), hidden inner (reduction).
    grid = (tokens_pad // tm, h_pad // th)

    # VMEM budget: double-buffered tiles + f32 accumulator + the
    # compiler-materialized intermediates (h13 f32, gated bf16, temps).
    out_bytes = jnp.dtype(x.dtype).itemsize
    est = (2 * tm * D * 2              # x tile (bf16) x2
           + 2 * (2 * th) * D * 2      # fused w1/w3 slab (bf16) x2
           + 2 * th * D * 2            # w2.T slab (bf16) x2
           + 2 * tm * D * out_bytes    # output tile x2
           + tm * D * 4                # f32 accumulator scratch
           + 12 * tm * th)             # h13 (f32) + gated (bf16) + temps
    try:
        phys_vmem = int(pltpu.get_tpu_info().vmem_capacity_bytes)
    except Exception:
        phys_vmem = 64 * 1024 * 1024   # conservative (v7x per-TC size)
    cap = int(phys_vmem * 0.85)        # leave headroom for internal scratch
    vmem_limit = min(cap, max(32 * 1024 * 1024, int(est * 1.3) + (4 << 20)))

    out2d = pl.pallas_call(
        functools.partial(_ffn_kernel, th=th),
        out_shape=jax.ShapeDtypeStruct((tokens_pad, D), x.dtype),
        grid_spec=pltpu.PrefetchScalarGridSpec(
            num_scalar_prefetch=0,
            grid=grid,
            in_specs=[
                pl.BlockSpec((tm, D), lambda i, h: (i, 0)),        # x token tile
                pl.BlockSpec((2 * th, D), lambda i, h: (h, 0)),    # fused w1/w3 slab
                pl.BlockSpec((th, D), lambda i, h: (h, 0)),        # w2.T slab
            ],
            out_specs=pl.BlockSpec((tm, D), lambda i, h: (i, 0)),
            scratch_shapes=[pltpu.VMEM((tm, D), jnp.float32)],
        ),
        compiler_params=pltpu.CompilerParams(
            dimension_semantics=("parallel", "arbitrary"),
            vmem_limit_bytes=int(vmem_limit),
        ),
    )(xb, weights.w13, weights.w2t)

    return out2d[:tokens].reshape(B, S, D)


def _llama_hidden_dim(dim, multiple_of, ffn_dim_multiplier):
    hidden = 4 * dim
    hidden = int(2 * hidden / 3)
    if ffn_dim_multiplier is not None:
        hidden = int(ffn_dim_multiplier * hidden)
    hidden = multiple_of * ((hidden + multiple_of - 1) // multiple_of)
    return hidden


if __name__ == "__main__":
    # Small, TPU-friendly config: dim=128, multiple_of=128, multiplier=1.0 -> hidden=384
    dim = 128
    multiple_of = 128
    ffn_dim_multiplier = 1.0
    hidden = _llama_hidden_dim(dim, multiple_of, ffn_dim_multiplier)  # 384

    batch, seq = 2, 8

    key = jax.random.PRNGKey(0)
    kx, k1, k2, k3 = jax.random.split(key, 4)
    x = jax.random.normal(kx, (batch, seq, dim), dtype=jnp.float32)
    # PyTorch nn.Linear weight shapes: (out_features, in_features)
    w1 = jax.random.normal(k1, (hidden, dim), dtype=jnp.float32) * 0.02
    w2 = jax.random.normal(k2, (dim, hidden), dtype=jnp.float32) * 0.02
    w3 = jax.random.normal(k3, (hidden, dim), dtype=jnp.float32) * 0.02

    # One-time weight prep (bf16 cast, pad, fuse w1/w3, pre-transpose w2).
    packed = pack_ffn_weights(w1, w2, w3, tile_h=512)

    out = feed_forward(x, packed)
    out = jax.block_until_ready(out)

    # Reference using the same precision policy (bf16 operands, f32 accumulate)
    # so the check validates the kernel structure, not bf16 quantization.
    def ref(x):
        xb = x.reshape(-1, dim).astype(jnp.bfloat16)
        w1b, w2b, w3b = (w.astype(jnp.bfloat16) for w in (w1, w2, w3))
        h1 = jnp.dot(xb, w1b.T, preferred_element_type=jnp.float32)
        h3 = jnp.dot(xb, w3b.T, preferred_element_type=jnp.float32)
        g = (jax.nn.silu(h1) * h3).astype(jnp.bfloat16)
        y = jnp.dot(g, w2b.T, preferred_element_type=jnp.float32)
        return y.reshape(x.shape)

    expected = ref(x)
    assert out.shape == (batch, seq, dim)
    assert out.dtype == x.dtype
    assert jnp.allclose(out, expected, atol=1e-3, rtol=1e-2), (
        "max abs diff = %f" % float(jnp.max(jnp.abs(out - expected))))
    print("KERNEL_OK")
</pallas_src>

<mosaic_0001>
module attributes {stable_mosaic.version = 11 : i64} {
  func.func @_ffn_kernel(%arg0: i32, %arg1: i32, %arg2: memref<128x128xbf16, #tpu.memory_space<vmem>>, %arg3: memref<768x128xbf16, #tpu.memory_space<vmem>>, %arg4: memref<384x128xbf16, #tpu.memory_space<vmem>>, %arg5: memref<128x128xf32, #tpu.memory_space<vmem>>, %arg6: memref<128x128xf32, #tpu.memory_space<vmem>>) attributes {dimension_semantics = [#tpu.dimension_semantics<parallel>, #tpu.dimension_semantics<arbitrary>], iteration_bounds = array<i64: 1, 1>, scalar_prefetch = 0 : i64, scratch_operands = 1 : i64, tpu.core_type = #tpu.core_type<tc>, window_params = [{transform_indices = @transform_0, window_bounds = array<i64: 128, 128>}, {transform_indices = @transform_1, window_bounds = array<i64: 768, 128>}, {transform_indices = @transform_2, window_bounds = array<i64: 384, 128>}, {transform_indices = @transform_3, window_bounds = array<i64: 128, 128>}]} {
    %c0_i32 = arith.constant 0 : i32
    %0 = arith.cmpi eq, %arg1, %c0_i32 : i32
    %1 = arith.extui %0 : i1 to i32
    %c0_i32_0 = arith.constant 0 : i32
    %2 = arith.cmpi ne, %1, %c0_i32_0 : i32
    scf.if %2 {
      %cst_14 = arith.constant 0.000000e+00 : f32
      %24 = vector.broadcast %cst_14 : f32 to vector<128x128xf32>
      %c0_15 = arith.constant 0 : index
      %c0_16 = arith.constant 0 : index
      %25 = vector.load %arg6[%c0_15, %c0_16] : memref<128x128xf32, #tpu.memory_space<vmem>>, vector<128x128xf32>
      tpu.vector_store %arg6[%c0_15, %c0_16], %24 {strides = array<i32>} : memref<128x128xf32, #tpu.memory_space<vmem>>, vector<128x128xf32>,
    } else {
    }
    %c0 = arith.constant 0 : index
    %c0_1 = arith.constant 0 : index
    %3 = vector.load %arg2[%c0, %c0_1] : memref<128x128xbf16, #tpu.memory_space<vmem>>, vector<128x128xbf16>
    %c0_2 = arith.constant 0 : index
    %c0_3 = arith.constant 0 : index
    %4 = vector.load %arg3[%c0_2, %c0_3] : memref<768x128xbf16, #tpu.memory_space<vmem>>, vector<768x128xbf16>
    %cst = arith.constant dense<0.000000e+00> : vector<128x768xf32>
    %5 = tpu.matmul %3, %4, %cst {dimension_numbers = #tpu.dot_dimension_numbers<[1], [1], [0], [0], [0, 0, 1, 0], [], []>} : vector<128x128xbf16>, vector<768x128xbf16>, vector<128x768xf32> -> vector<128x768xf32>
    %6 = vector.extract_strided_slice %5 {offsets = [0, 0], sizes = [128, 384], strides = [1, 1]} : vector<128x768xf32> to vector<128x384xf32>
    %7 = vector.extract_strided_slice %5 {offsets = [0, 384], sizes = [128, 384], strides = [1, 1]} : vector<128x768xf32> to vector<128x384xf32>
    %8 = arith.negf %6 : vector<128x384xf32>
    %9 = math.exp %8 : vector<128x384xf32>
    %cst_4 = arith.constant 1.000000e+00 : f32
    %10 = vector.broadcast %cst_4 : f32 to vector<128x384xf32>
    %11 = arith.addf %10, %9 : vector<128x384xf32>
    %12 = arith.divf %10, %11 : vector<128x384xf32>
    %13 = arith.mulf %6, %12 : vector<128x384xf32>
    %14 = arith.mulf %13, %7 : vector<128x384xf32>
    %15 = arith.truncf %14 : vector<128x384xf32> to vector<128x384xbf16>
    %c0_5 = arith.constant 0 : index
    %c0_6 = arith.constant 0 : index
    %16 = vector.load %arg6[%c0_5, %c0_6] : memref<128x128xf32, #tpu.memory_space<vmem>>, vector<128x128xf32>
    %c0_7 = arith.constant 0 : index
    %c0_8 = arith.constant 0 : index
    %17 = vector.load %arg4[%c0_7, %c0_8] : memref<384x128xbf16, #tpu.memory_space<vmem>>, vector<384x128xbf16>
    %cst_9 = arith.constant dense<0.000000e+00> : vector<128x128xf32>
    %18 = tpu.matmul %15, %17, %cst_9 {dimension_numbers = #tpu.dot_dimension_numbers<[1], [0], [0], [1], [0, 0, 1, 1], [], []>} : vector<128x384xbf16>, vector<384x128xbf16>, vector<128x128xf32> -> vector<128x128xf32>
    %19 = arith.addf %16, %18 : vector<128x128xf32>
    %c0_10 = arith.constant 0 : index
    %c0_11 = arith.constant 0 : index
    %20 = vector.load %arg6[%c0_10, %c0_11] : memref<128x128xf32, #tpu.memory_space<vmem>>, vector<128x128xf32>
    tpu.vector_store %arg6[%c0_10, %c0_11], %19 {strides = array<i32>} : memref<128x128xf32, #tpu.memory_space<vmem>>, vector<128x128xf32>,
    %c0_i32_12 = arith.constant 0 : i32
    %21 = arith.cmpi eq, %arg1, %c0_i32_12 : i32
    %22 = arith.extui %21 : i1 to i32
    %c0_i32_13 = arith.constant 0 : i32
    %23 = arith.cmpi ne, %22, %c0_i32_13 : i32
    scf.if %23 {
      %c0_14 = arith.constant 0 : index
      %c0_15 = arith.constant 0 : index
      %24 = vector.load %arg6[%c0_14, %c0_15] : memref<128x128xf32, #tpu.memory_space<vmem>>, vector<128x128xf32>
      %c0_16 = arith.constant 0 : index
      %c0_17 = arith.constant 0 : index
      %25 = vector.load %arg5[%c0_16, %c0_17] : memref<128x128xf32, #tpu.memory_space<vmem>>, vector<128x128xf32>
      tpu.vector_store %arg5[%c0_16, %c0_17], %24 {strides = array<i32>} : memref<128x128xf32, #tpu.memory_space<vmem>>, vector<128x128xf32>,
    } else {
    }
    return
  }
  func.func @transform_0(%arg0: i32, %arg1: i32) -> (i32, i32) {
    %c0_i32 = arith.constant 0 : i32
    %c0_i32_0 = arith.constant 0 : i32
    return %arg0, %c0_i32 : i32, i32
  }
  func.func @transform_1(%arg0: i32, %arg1: i32) -> (i32, i32) {
    %c0_i32 = arith.constant 0 : i32
    %c0_i32_0 = arith.constant 0 : i32
    return %arg1, %c0_i32 : i32, i32
  }
  func.func @transform_2(%arg0: i32, %arg1: i32) -> (i32, i32) {
    %c0_i32 = arith.constant 0 : i32
    %c0_i32_0 = arith.constant 0 : i32
    return %arg1, %c0_i32 : i32, i32
  }
  func.func @transform_3(%arg0: i32, %arg1: i32) -> (i32, i32) {
    %c0_i32 = arith.constant 0 : i32
    %c0_i32_0 = arith.constant 0 : i32
    return %arg0, %c0_i32 : i32, i32
  }
}

</mosaic_0001>

<llo_original>
// kernel: tpu_custom_call.1
$region0: #{tpu_custom_call.1}
  #allocation0 [shape = 'u32[]', space=smem, size = 0x4, offset = 0x4, fixed_abs, tag = 'smem constant byte address 0x4 - core index']
  #allocation1 [shape = 'u32[144,128]{1,0:T(1,128)}', space=vmem, size = 0x12000, scoped, tag = 'internal scratch']
  #allocation2 [shape = 'f32[128,128]{1,0:T(8,128)}', space=vmem, size = 0x10000, scoped, tag = 'scratch operand']
  %s0 = inlined_call_operand.hbm [shape: bf16[128,128], index: 0, kind: input, shape index: {}]
  %s1 = inlined_call_operand.hbm [shape: bf16[768,128], index: 1, kind: input, shape index: {}]
  %s2 = inlined_call_operand.hbm [shape: bf16[384,128], index: 2, kind: input, shape index: {}]
  %s3 = inlined_call_operand.hbm [shape: f32[128,128], index: 3, kind: output, shape index: {}]
  %s4 = sld [smem:[#allocation0]]
  $region42: #{tpu_custom_call.1} parent=0
    _
  %s6 = ssub.s32 1, %s4
  %s7 = scalar_select 0, %s6, %s4
  $region1: #{tpu_custom_call.1} parent=0
    #allocation3 [shape = 'u8[32768]{0}', space=vmem, size = 0x8000, scoped, tag = 'input window, operand 0, single buffered']
    #allocation4 [shape = 's32[1]{0}', space=sflag, size = 0x4, scoped, tag = 'scoped memory for tpu_custom_call.1']
    #allocation5 [shape = 's32[1]{0}', space=sflag, size = 0x4, scoped, tag = 'scoped memory for tpu_custom_call.1']
    #allocation6 [shape = 'u8[196608]{0}', space=vmem, size = 0x30000, scoped, tag = 'input window, operand 1, single buffered']
    #allocation7 [shape = 's32[1]{0}', space=sflag, size = 0x4, scoped, tag = 'scoped memory for tpu_custom_call.1']
    #allocation8 [shape = 'u8[98304]{0}', space=vmem, size = 0x18000, scoped, tag = 'input window, operand 2, single buffered']
    #allocation9 [shape = 'u8[65536]{0}', space=vmem, size = 0x10000, scoped, tag = 'output window, operand 0, single buffered']
    %8 = vsyncpa [#allocation4], 0
    %9 = vsyncpa [#allocation7], 0
    %10 = vsyncpa [#allocation5], 0
    // Predicated region
    $region2: #{tpu_custom_call.1} parent=1 // pred_check
      _
    $region3: #{tpu_custom_call.1} parent=1 // pred_check_branch
      %12 = sbr.rel (0) target = $region5
    $region4: #{tpu_custom_call.1} parent=1 // pred_region
      %s14 = ssub.s32 1024, 1024
      %15 = vsyncadd [#allocation4], %s14
      %s16 = sshll.u32 [#allocation3], 4
      %s17 = int_to_ptr.vmem [resolvable:$true] %s16
      %22 = dma.hbm_to_vmem [thread:$0]  %s0, 1024, %s17, [#allocation4], 64, 64, 4
    $region5: #{tpu_custom_call.1} parent=1 // pred_fallthru
      _
    // Predicated region
    $region6: #{tpu_custom_call.1} parent=1 // pred_check
      _
    $region7: #{tpu_custom_call.1} parent=1 // pred_check_branch
      %24 = sbr.rel (0) target = $region9
    $region8: #{tpu_custom_call.1} parent=1 // pred_region
      %s26 = ssub.s32 6144, 6144
      %27 = vsyncadd [#allocation7], %s26
      %s28 = sshll.u32 [#allocation6], 4
      %s29 = int_to_ptr.vmem [resolvable:$true] %s28
      %34 = dma.hbm_to_vmem [thread:$0]  %s1, 6144, %s29, [#allocation7], 64, 64, 4
    $region9: #{tpu_custom_call.1} parent=1 // pred_fallthru
      _
    // Predicated region
    $region10: #{tpu_custom_call.1} parent=1 // pred_check
      _
    $region11: #{tpu_custom_call.1} parent=1 // pred_check_branch
      %36 = sbr.rel (0) target = $region13
    $region12: #{tpu_custom_call.1} parent=1 // pred_region
      %s38 = ssub.s32 3072, 3072
      %39 = vsyncadd [#allocation7], %s38
      %s40 = sshll.u32 [#allocation8], 4
      %s41 = int_to_ptr.vmem [resolvable:$true] %s40
      %46 = dma.hbm_to_vmem [thread:$0]  %s2, 3072, %s41, [#allocation7], 64, 64, 4
    $region13: #{tpu_custom_call.1} parent=1 // pred_fallthru
      _
    // Predicated region
    $region14: #{tpu_custom_call.1} parent=1 // pred_check
      _
    $region15: #{tpu_custom_call.1} parent=1 // pred_check_branch
      %48 = sbr.rel (0) target = $region17
    $region16: #{tpu_custom_call.1} parent=1 // pred_region
      %49 = dma.done [#allocation4], 1024
    $region17: #{tpu_custom_call.1} parent=1 // pred_fallthru
      _
    // Predicated region
    $region18: #{tpu_custom_call.1} parent=1 // pred_check
      _
    $region19: #{tpu_custom_call.1} parent=1 // pred_check_branch
      %51 = sbr.rel (0) target = $region21
    $region20: #{tpu_custom_call.1} parent=1 // pred_region
      %52 = dma.done [#allocation7], 6144
    $region21: #{tpu_custom_call.1} parent=1 // pred_fallthru
      _
    // Predicated region
    $region22: #{tpu_custom_call.1} parent=1 // pred_check
      _
    $region23: #{tpu_custom_call.1} parent=1 // pred_check_branch
      %54 = sbr.rel (0) target = $region25
    $region24: #{tpu_custom_call.1} parent=1 // pred_region
      %55 = dma.done [#allocation7], 3072
    $region25: #{tpu_custom_call.1} parent=1 // pred_fallthru
      _
    %p57 = scmp.eq.s32.totalorder 0, 0
    // Predicated region
    $region26: #{tpu_custom_call.1} parent=1 // pred_check
      %p58 = pneg %p57
    $region27: #{tpu_custom_call.1} parent=1 // pred_check_branch
      %60 = sbr.rel (%p58) target = $region29
    $region28: #{tpu_custom_call.1} parent=1 // pred_region
      %61 = vst [vmem:[#allocation2] sm:$0xff] 0.0
      %62 = vst [vmem:[#allocation2 + $0x8] sm:$0xff] 0.0
      %63 = vst [vmem:[#allocation2 + $0x10] sm:$0xff] 0.0
      %64 = vst [vmem:[#allocation2 + $0x18] sm:$0xff] 0.0
      %65 = vst [vmem:[#allocation2 + $0x20] sm:$0xff] 0.0
      %66 = vst [vmem:[#allocation2 + $0x28] sm:$0xff] 0.0
      %67 = vst [vmem:[#allocation2 + $0x30] sm:$0xff] 0.0
      %68 = vst [vmem:[#allocation2 + $0x38] sm:$0xff] 0.0
      %69 = vst [vmem:[#allocation2 + $0x40] sm:$0xff] 0.0
      %70 = vst [vmem:[#allocation2 + $0x48] sm:$0xff] 0.0
      %71 = vst [vmem:[#allocation2 + $0x50] sm:$0xff] 0.0
      %72 = vst [vmem:[#allocation2 + $0x58] sm:$0xff] 0.0
      %73 = vst [vmem:[#allocation2 + $0x60] sm:$0xff] 0.0
      %74 = vst [vmem:[#allocation2 + $0x68] sm:$0xff] 0.0
      %75 = vst [vmem:[#allocation2 + $0x70] sm:$0xff] 0.0
      %76 = vst [vmem:[#allocation2 + $0x78] sm:$0xff] 0.0
    $region29: #{tpu_custom_call.1} parent=1 // pred_fallthru
      _
    %v77 = vld [vmem:[#allocation3] sm:$0xf]
    %v78 = vld [vmem:[#allocation3 + $0x4] sm:$0xf]
    %v79 = vld [vmem:[#allocation3 + $0x8] sm:$0xf]
    %v80 = vld [vmem:[#allocation3 + $0xc] sm:$0xf]
    %v81 = vld [vmem:[#allocation3 + $0x10] sm:$0xf]
    %v82 = vld [vmem:[#allocation3 + $0x14] sm:$0xf]
    %v83 = vld [vmem:[#allocation3 + $0x18] sm:$0xf]
    %v84 = vld [vmem:[#allocation3 + $0x1c] sm:$0xf]
    %v85 = vld [vmem:[#allocation3 + $0x20] sm:$0xf]
    %v86 = vld [vmem:[#allocation3 + $0x24] sm:$0xf]
    %v87 = vld [vmem:[#allocation3 + $0x28] sm:$0xf]
    %v88 = vld [vmem:[#allocation3 + $0x2c] sm:$0xf]
    %v89 = vld [vmem:[#allocation3 + $0x30] sm:$0xf]
    %v90 = vld [vmem:[#allocation3 + $0x34] sm:$0xf]
    %v91 = vld [vmem:[#allocation3 + $0x38] sm:$0xf]
    %v92 = vld [vmem:[#allocation3 + $0x3c] sm:$0xf]
    %v93 = vld [vmem:[#allocation6] sm:$0xf]
    %v94 = vld [vmem:[#allocation6 + $0x4] sm:$0xf]
    %v95 = vld [vmem:[#allocation6 + $0x8] sm:$0xf]
    %v96 = vld [vmem:[#allocation6 + $0xc] sm:$0xf]
    %v97 = vld [vmem:[#allocation6 + $0x10] sm:$0xf]
    %v98 = vld [vmem:[#allocation6 + $0x14] sm:$0xf]
    %v99 = vld [vmem:[#allocation6 + $0x18] sm:$0xf]
    %v100 = vld [vmem:[#allocation6 + $0x1c] sm:$0xf]
    %v101 = vld [vmem:[#allocation6 + $0x20] sm:$0xf]
    %v102 = vld [vmem:[#allocation6 + $0x24] sm:$0xf]
    %v103 = vld [vmem:[#allocation6 + $0x28] sm:$0xf]
    %v104 = vld [vmem:[#allocation6 + $0x2c] sm:$0xf]
    %v105 = vld [vmem:[#allocation6 + $0x30] sm:$0xf]
    %v106 = vld [vmem:[#allocation6 + $0x34] sm:$0xf]
    %v107 = vld [vmem:[#allocation6 + $0x38] sm:$0xf]
    %v108 = vld [vmem:[#allocation6 + $0x3c] sm:$0xf]
    %v109 = vld [vmem:[#allocation6 + $0x40] sm:$0xf]
    %v110 = vld [vmem:[#allocation6 + $0x44] sm:$0xf]
    %v111 = vld [vmem:[#allocation6 + $0x48] sm:$0xf]
    %v112 = vld [vmem:[#allocation6 + $0x4c] sm:$0xf]
    %v113 = vld [vmem:[#allocation6 + $0x50] sm:$0xf]
    %v114 = vld [vmem:[#allocation6 + $0x54] sm:$0xf]
    %v115 = vld [vmem:[#allocation6 + $0x58] sm:$0xf]
    %v116 = vld [vmem:[#allocation6 + $0x5c] sm:$0xf]
    %v117 = vld [vmem:[#allocation6 + $0x60] sm:$0xf]
    %v118 = vld [vmem:[#allocation6 + $0x64] sm:$0xf]
    %v119 = vld [vmem:[#allocation6 + $0x68] sm:$0xf]
    %v120 = vld [vmem:[#allocation6 + $0x6c] sm:$0xf]
    %v121 = vld [vmem:[#allocation6 + $0x70] sm:$0xf]
    %v122 = vld [vmem:[#allocation6 + $0x74] sm:$0xf]
    %v123 = vld [vmem:[#allocation6 + $0x78] sm:$0xf]
    %v124 = vld [vmem:[#allocation6 + $0x7c] sm:$0xf]
    %v125 = vld [vmem:[#allocation6 + $0x80] sm:$0xf]
    %v126 = vld [vmem:[#allocation6 + $0x84] sm:$0xf]
    %v127 = vld [vmem:[#allocation6 + $0x88] sm:$0xf]
    %v128 = vld [vmem:[#allocation6 + $0x8c] sm:$0xf]
    %v129 = vld [vmem:[#allocation6 + $0x90] sm:$0xf]
    %v130 = vld [vmem:[#allocation6 + $0x94] sm:$0xf]
    %v131 = vld [vmem:[#allocation6 + $0x98] sm:$0xf]
    %v132 = vld [vmem:[#allocation6 + $0x9c] sm:$0xf]
    %v133 = vld [vmem:[#allocation6 + $0xa0] sm:$0xf]
    %v134 = vld [vmem:[#allocation6 + $0xa4] sm:$0xf]
    %v135 = vld [vmem:[#allocation6 + $0xa8] sm:$0xf]
    %v136 = vld [vmem:[#allocation6 + $0xac] sm:$0xf]
    %v137 = vld [vmem:[#allocation6 + $0xb0] sm:$0xf]
    %v138 = vld [vmem:[#allocation6 + $0xb4] sm:$0xf]
    %v139 = vld [vmem:[#allocation6 + $0xb8] sm:$0xf]
    %v140 = vld [vmem:[#allocation6 + $0xbc] sm:$0xf]
    %v141 = vld [vmem:[#allocation6 + $0xc0] sm:$0xf]
    %v142 = vld [vmem:[#allocation6 + $0xc4] sm:$0xf]
    %v143 = vld [vmem:[#allocation6 + $0xc8] sm:$0xf]
    %v144 = vld [vmem:[#allocation6 + $0xcc] sm:$0xf]
    %v145 = vld [vmem:[#allocation6 + $0xd0] sm:$0xf]
    %v146 = vld [vmem:[#allocation6 + $0xd4] sm:$0xf]
    %v147 = vld [vmem:[#allocation6 + $0xd8] sm:$0xf]
    %v148 = vld [vmem:[#allocation6 + $0xdc] sm:$0xf]
    %v149 = vld [vmem:[#allocation6 + $0xe0] sm:$0xf]
    %v150 = vld [vmem:[#allocation6 + $0xe4] sm:$0xf]
    %v151 = vld [vmem:[#allocation6 + $0xe8] sm:$0xf]
    %v152 = vld [vmem:[#allocation6 + $0xec] sm:$0xf]
    %v153 = vld [vmem:[#allocation6 + $0xf0] sm:$0xf]
    %v154 = vld [vmem:[#allocation6 + $0xf4] sm:$0xf]
    %v155 = vld [vmem:[#allocation6 + $0xf8] sm:$0xf]
    %v156 = vld [vmem:[#allocation6 + $0xfc] sm:$0xf]
    %v157 = vld [vmem:[#allocation6 + $0x100] sm:$0xf]
    %v158 = vld [vmem:[#allocation6 + $0x104] sm:$0xf]
    %v159 = vld [vmem:[#allocation6 + $0x108] sm:$0xf]
    %v160 = vld [vmem:[#allocation6 + $0x10c] sm:$0xf]
    %v161 = vld [vmem:[#allocation6 + $0x110] sm:$0xf]
    %v162 = vld [vmem:[#allocation6 + $0x114] sm:$0xf]
    %v163 = vld [vmem:[#allocation6 + $0x118] sm:$0xf]
    %v164 = vld [vmem:[#allocation6 + $0x11c] sm:$0xf]
    %v165 = vld [vmem:[#allocation6 + $0x120] sm:$0xf]
    %v166 = vld [vmem:[#allocation6 + $0x124] sm:$0xf]
    %v167 = vld [vmem:[#allocation6 + $0x128] sm:$0xf]
    %v168 = vld [vmem:[#allocation6 + $0x12c] sm:$0xf]
    %v169 = vld [vmem:[#allocation6 + $0x130] sm:$0xf]
    %v170 = vld [vmem:[#allocation6 + $0x134] sm:$0xf]
    %v171 = vld [vmem:[#allocation6 + $0x138] sm:$0xf]
    %v172 = vld [vmem:[#allocation6 + $0x13c] sm:$0xf]
    %v173 = vld [vmem:[#allocation6 + $0x140] sm:$0xf]
    %v174 = vld [vmem:[#allocation6 + $0x144] sm:$0xf]
    %v175 = vld [vmem:[#allocation6 + $0x148] sm:$0xf]
    %v176 = vld [vmem:[#allocation6 + $0x14c] sm:$0xf]
    %v177 = vld [vmem:[#allocation6 + $0x150] sm:$0xf]
    %v178 = vld [vmem:[#allocation6 + $0x154] sm:$0xf]
    %v179 = vld [vmem:[#allocation6 + $0x158] sm:$0xf]
    %v180 = vld [vmem:[#allocation6 + $0x15c] sm:$0xf]
    %v181 = vld [vmem:[#allocation6 + $0x160] sm:$0xf]
    %v182 = vld [vmem:[#allocation6 + $0x164] sm:$0xf]
    %v183 = vld [vmem:[#allocation6 + $0x168] sm:$0xf]
    %v184 = vld [vmem:[#allocation6 + $0x16c] sm:$0xf]
    %v185 = vld [vmem:[#allocation6 + $0x170] sm:$0xf]
    %v186 = vld [vmem:[#allocation6 + $0x174] sm:$0xf]
    %v187 = vld [vmem:[#allocation6 + $0x178] sm:$0xf]
    %v188 = vld [vmem:[#allocation6 + $0x17c] sm:$0xf]
    %v205 = vunpack.c.l.b16 %v77
    %v206 = vunpack.c.l.b16 %v78
    %v207 = vunpack.c.l.b16 %v79
    %v208 = vunpack.c.l.b16 %v80
    %v209 = vunpack.c.l.b16 %v81
    %v210 = vunpack.c.l.b16 %v82
    %v211 = vunpack.c.l.b16 %v83
    %v212 = vunpack.c.l.b16 %v84
    %v213 = vunpack.c.l.b16 %v85
    %v214 = vunpack.c.l.b16 %v86
    %v215 = vunpack.c.l.b16 %v87
    %v216 = vunpack.c.l.b16 %v88
    %v217 = vunpack.c.l.b16 %v89
    %v218 = vunpack.c.l.b16 %v90
    %v219 = vunpack.c.l.b16 %v91
    %v220 = vunpack.c.l.b16 %v92
    %v221 = vpack.c.b16 %v206, %v205
    %v222 = vpack.c.b16 %v208, %v207
    %v223 = vpack.c.b16 %v210, %v209
    %v224 = vpack.c.b16 %v212, %v211
    %v225 = vpack.c.b16 %v214, %v213
    %v226 = vpack.c.b16 %v216, %v215
    %v227 = vpack.c.b16 %v218, %v217
    %v228 = vpack.c.b16 %v220, %v219
    %v333 = vunpack.c.l.b16 %v93
    %v334 = vunpack.c.l.b16 %v94
    %v335 = vunpack.c.l.b16 %v95
    %v336 = vunpack.c.l.b16 %v96
    %v337 = vunpack.c.l.b16 %v97
    %v338 = vunpack.c.l.b16 %v98
    %v339 = vunpack.c.l.b16 %v99
    %v340 = vunpack.c.l.b16 %v100
    %v341 = vunpack.c.l.b16 %v101
    %v342 = vunpack.c.l.b16 %v102
    %v343 = vunpack.c.l.b16 %v103
    %v344 = vunpack.c.l.b16 %v104
    %v345 = vunpack.c.l.b16 %v105
    %v346 = vunpack.c.l.b16 %v106
    %v347 = vunpack.c.l.b16 %v107
    %v348 = vunpack.c.l.b16 %v108
    %v349 = vunpack.c.l.b16 %v109
    %v350 = vunpack.c.l.b16 %v110
    %v351 = vunpack.c.l.b16 %v111
    %v352 = vunpack.c.l.b16 %v112
    %v353 = vunpack.c.l.b16 %v113
    %v354 = vunpack.c.l.b16 %v114
    %v355 = vunpack.c.l.b16 %v115
    %v356 = vunpack.c.l.b16 %v116
    %v357 = vunpack.c.l.b16 %v117
    %v358 = vunpack.c.l.b16 %v118
    %v359 = vunpack.c.l.b16 %v119
    %v360 = vunpack.c.l.b16 %v120
    %v361 = vunpack.c.l.b16 %v121
    %v362 = vunpack.c.l.b16 %v122
    %v363 = vunpack.c.l.b16 %v123
    %v364 = vunpack.c.l.b16 %v124
    %v365 = vunpack.c.l.b16 %v125
    %v366 = vunpack.c.l.b16 %v126
    %v367 = vunpack.c.l.b16 %v127
    %v368 = vunpack.c.l.b16 %v128
    %v369 = vunpack.c.l.b16 %v129
    %v370 = vunpack.c.l.b16 %v130
    %v371 = vunpack.c.l.b16 %v131
    %v372 = vunpack.c.l.b16 %v132
    %v373 = vunpack.c.l.b16 %v133
    %v374 = vunpack.c.l.b16 %v134
    %v375 = vunpack.c.l.b16 %v135
    %v376 = vunpack.c.l.b16 %v136
    %v377 = vunpack.c.l.b16 %v137
    %v378 = vunpack.c.l.b16 %v138
    %v379 = vunpack.c.l.b16 %v139
    %v380 = vunpack.c.l.b16 %v140
    %v381 = vunpack.c.l.b16 %v141
    %v382 = vunpack.c.l.b16 %v142
    %v383 = vunpack.c.l.b16 %v143
    %v384 = vunpack.c.l.b16 %v144
    %v385 = vunpack.c.l.b16 %v145
    %v386 = vunpack.c.l.b16 %v146
    %v387 = vunpack.c.l.b16 %v147
    %v388 = vunpack.c.l.b16 %v148
    %v389 = vunpack.c.l.b16 %v149
    %v390 = vunpack.c.l.b16 %v150
    %v391 = vunpack.c.l.b16 %v151
    %v392 = vunpack.c.l.b16 %v152
    %v393 = vunpack.c.l.b16 %v153
    %v394 = vunpack.c.l.b16 %v154
    %v395 = vunpack.c.l.b16 %v155
    %v396 = vunpack.c.l.b16 %v156
    %v397 = vunpack.c.l.b16 %v157
    %v398 = vunpack.c.l.b16 %v158
    %v399 = vunpack.c.l.b16 %v159
    %v400 = vunpack.c.l.b16 %v160
    %v401 = vunpack.c.l.b16 %v161
    %v402 = vunpack.c.l.b16 %v162
    %v403 = vunpack.c.l.b16 %v163
    %v404 = vunpack.c.l.b16 %v164
    %v405 = vunpack.c.l.b16 %v165
    %v406 = vunpack.c.l.b16 %v166
    %v407 = vunpack.c.l.b16 %v167
    %v408 = vunpack.c.l.b16 %v168
    %v409 = vunpack.c.l.b16 %v169
    %v410 = vunpack.c.l.b16 %v170
    %v411 = vunpack.c.l.b16 %v171
    %v412 = vunpack.c.l.b16 %v172
    %v413 = vunpack.c.l.b16 %v173
    %v414 = vunpack.c.l.b16 %v174
    %v415 = vunpack.c.l.b16 %v175
    %v416 = vunpack.c.l.b16 %v176
    %v417 = vunpack.c.l.b16 %v177
    %v418 = vunpack.c.l.b16 %v178
    %v419 = vunpack.c.l.b16 %v179
    %v420 = vunpack.c.l.b16 %v180
    %v421 = vunpack.c.l.b16 %v181
    %v422 = vunpack.c.l.b16 %v182
    %v423 = vunpack.c.l.b16 %v183
    %v424 = vunpack.c.l.b16 %v184
    %v425 = vunpack.c.l.b16 %v185
    %v426 = vunpack.c.l.b16 %v186
    %v427 = vunpack.c.l.b16 %v187
    %v428 = vunpack.c.l.b16 %v188
    %v429 = vpack.c.b16 %v334, %v333
    %v430 = vpack.c.b16 %v336, %v335
    %v431 = vpack.c.b16 %v338, %v337
    %v432 = vpack.c.b16 %v340, %v339
    %v433 = vpack.c.b16 %v342, %v341
    %v434 = vpack.c.b16 %v344, %v343
    %v435 = vpack.c.b16 %v346, %v345
    %v436 = vpack.c.b16 %v348, %v347
    %v437 = vpack.c.b16 %v350, %v349
    %v438 = vpack.c.b16 %v352, %v351
    %v439 = vpack.c.b16 %v354, %v353
    %v440 = vpack.c.b16 %v356, %v355
    %v441 = vpack.c.b16 %v358, %v357
    %v442 = vpack.c.b16 %v360, %v359
    %v443 = vpack.c.b16 %v362, %v361
    %v444 = vpack.c.b16 %v364, %v363
    %v445 = vpack.c.b16 %v366, %v365
    %v446 = vpack.c.b16 %v368, %v367
    %v447 = vpack.c.b16 %v370, %v369
    %v448 = vpack.c.b16 %v372, %v371
    %v449 = vpack.c.b16 %v374, %v373
    %v450 = vpack.c.b16 %v376, %v375
    %v451 = vpack.c.b16 %v378, %v377
    %v452 = vpack.c.b16 %v380, %v379
    %v453 = vpack.c.b16 %v382, %v381
    %v454 = vpack.c.b16 %v384, %v383
    %v455 = vpack.c.b16 %v386, %v385
    %v456 = vpack.c.b16 %v388, %v387
    %v457 = vpack.c.b16 %v390, %v389
    %v458 = vpack.c.b16 %v392, %v391
    %v459 = vpack.c.b16 %v394, %v393
    %v460 = vpack.c.b16 %v396, %v395
    %v461 = vpack.c.b16 %v398, %v397
    %v462 = vpack.c.b16 %v400, %v399
    %v463 = vpack.c.b16 %v402, %v401
    %v464 = vpack.c.b16 %v404, %v403
    %v465 = vpack.c.b16 %v406, %v405
    %v466 = vpack.c.b16 %v408, %v407
    %v467 = vpack.c.b16 %v410, %v409
    %v468 = vpack.c.b16 %v412, %v411
    %v469 = vpack.c.b16 %v414, %v413
    %v470 = vpack.c.b16 %v416, %v415
    %v471 = vpack.c.b16 %v418, %v417
    %v472 = vpack.c.b16 %v420, %v419
    %v473 = vpack.c.b16 %v422, %v421
    %v474 = vpack.c.b16 %v424, %v423
    %v475 = vpack.c.b16 %v426, %v425
    %v476 = vpack.c.b16 %v428, %v427
    %525 = vmatprep.subr.bf16.mxu0 0
    %526 = vmatpush1.bf16.xpose.msra.mxu0 %v429
    %527 = vmatprep.subr.bf16.mxu0 0
    %528 = vmatpush1.bf16.xpose.msra.mxu0 %v430
    %529 = vmatprep.subr.bf16.mxu0 0
    %530 = vmatpush1.bf16.xpose.msra.mxu0 %v431
    %531 = vmatprep.subr.bf16.mxu0 0
    %532 = vmatpush1.bf16.xpose.msra.mxu0 %v432
    %533 = vmatprep.subr.bf16.mxu0 0
    %534 = vmatpush1.bf16.xpose.msra.mxu0 %v433
    %535 = vmatprep.subr.bf16.mxu0 0
    %536 = vmatpush1.bf16.xpose.msra.mxu0 %v434
    %537 = vmatprep.subr.bf16.mxu0 0
    %538 = vmatpush1.bf16.xpose.msra.mxu0 %v435
    %539 = vmatprep.subr.bf16.mxu0 0
    %540 = vmatpush1.bf16.xpose.msra.mxu0 %v436
    %541 = vmatprep.subr.bf16.mxu0 0
    %542 = vmatpush1.bf16.xpose.msra.mxu0 %v437
    %543 = vmatprep.subr.bf16.mxu0 0
    %544 = vmatpush1.bf16.xpose.msra.mxu0 %v438
    %545 = vmatprep.subr.bf16.mxu0 0
    %546 = vmatpush1.bf16.xpose.msra.mxu0 %v439
    %547 = vmatprep.subr.bf16.mxu0 0
    %548 = vmatpush1.bf16.xpose.msra.mxu0 %v440
    %549 = vmatprep.subr.bf16.mxu0 0
    %550 = vmatpush1.bf16.xpose.msra.mxu0 %v441
    %551 = vmatprep.subr.bf16.mxu0 0
    %552 = vmatpush1.bf16.xpose.msra.mxu0 %v442
    %553 = vmatprep.subr.bf16.mxu0 0
    %554 = vmatpush1.bf16.xpose.msra.mxu0 %v443
    %555 = vmatprep.subr.bf16.mxu0 0
    %556 = vmatpush1.bf16.xpose.msra.mxu0 %v444
    %557 = vmatprep.mubr.bf16.mxu0 0
    %558 = vmatmul.mubr.bf16.gmra.mrb[0].mxu0 %v221
    %v559 = vpop.f32.mrb[0].mxu0
    %v560 = vadd.f32 0.0, %v559
    %v561 = vpop.f32.mrb[0].mxu0
    %v562 = vadd.f32 0.0, %v561
    %v563 = vpop.f32.mrb[0].mxu0
    %v564 = vadd.f32 0.0, %v563
    %v565 = vpop.f32.mrb[0].mxu0
    %v566 = vadd.f32 0.0, %v565
    %567 = vmatprep.mubr.bf16.mxu0 0
    %568 = vmatmul.mubr.bf16.gmra.mrb[0].mxu0 %v222
    %v569 = vpop.f32.mrb[0].mxu0
    %v570 = vadd.f32 0.0, %v569
    %v571 = vpop.f32.mrb[0].mxu0
    %v572 = vadd.f32 0.0, %v571
    %v573 = vpop.f32.mrb[0].mxu0
    %v574 = vadd.f32 0.0, %v573
    %v575 = vpop.f32.mrb[0].mxu0
    %v576 = vadd.f32 0.0, %v575
    %577 = vmatprep.mubr.bf16.mxu0 0
    %578 = vmatmul.mubr.bf16.gmra.mrb[0].mxu0 %v223
    %v579 = vpop.f32.mrb[0].mxu0
    %v580 = vadd.f32 0.0, %v579
    %v581 = vpop.f32.mrb[0].mxu0
    %v582 = vadd.f32 0.0, %v581
    %v583 = vpop.f32.mrb[0].mxu0
    %v584 = vadd.f32 0.0, %v583
    %v585 = vpop.f32.mrb[0].mxu0
    %v586 = vadd.f32 0.0, %v585
    %587 = vmatprep.mubr.bf16.mxu0 0
    %588 = vmatmul.mubr.bf16.gmra.mrb[0].mxu0 %v224
    %v589 = vpop.f32.mrb[0].mxu0
    %v590 = vadd.f32 0.0, %v589
    %v591 = vpop.f32.mrb[0].mxu0
    %v592 = vadd.f32 0.0, %v591
    %v593 = vpop.f32.mrb[0].mxu0
    %v594 = vadd.f32 0.0, %v593
    %v595 = vpop.f32.mrb[0].mxu0
    %v596 = vadd.f32 0.0, %v595
    %597 = vmatprep.mubr.bf16.mxu0 0
    %598 = vmatmul.mubr.bf16.gmra.mrb[0].mxu0 %v225
    %v599 = vpop.f32.mrb[0].mxu0
    %v600 = vadd.f32 0.0, %v599
    %v601 = vpop.f32.mrb[0].mxu0
    %v602 = vadd.f32 0.0, %v601
    %v603 = vpop.f32.mrb[0].mxu0
    %v604 = vadd.f32 0.0, %v603
    %v605 = vpop.f32.mrb[0].mxu0
    %v606 = vadd.f32 0.0, %v605
    %607 = vmatprep.mubr.bf16.mxu0 0
    %608 = vmatmul.mubr.bf16.gmra.mrb[0].mxu0 %v226
    %v609 = vpop.f32.mrb[0].mxu0
    %v610 = vadd.f32 0.0, %v609
    %v611 = vpop.f32.mrb[0].mxu0
    %v612 = vadd.f32 0.0, %v611
    %v613 = vpop.f32.mrb[0].mxu0
    %v614 = vadd.f32 0.0, %v613
    %v615 = vpop.f32.mrb[0].mxu0
    %v616 = vadd.f32 0.0, %v615
    %617 = vmatprep.mubr.bf16.mxu0 0
    %618 = vmatmul.mubr.bf16.gmra.mrb[0].mxu0 %v227
    %v619 = vpop.f32.mrb[0].mxu0
    %v620 = vadd.f32 0.0, %v619
    %v621 = vpop.f32.mrb[0].mxu0
    %v622 = vadd.f32 0.0, %v621
    %v623 = vpop.f32.mrb[0].mxu0
    %v624 = vadd.f32 0.0, %v623
    %v625 = vpop.f32.mrb[0].mxu0
    %v626 = vadd.f32 0.0, %v625
    %627 = vmatprep.mubr.bf16.mxu0 0
    %628 = vmatmul.mubr.bf16.gmra.mrb[0].mxu0 %v228
    %v629 = vpop.f32.mrb[0].mxu0
    %v630 = vadd.f32 0.0, %v629
    %v631 = vpop.f32.mrb[0].mxu0
    %v632 = vadd.f32 0.0, %v631
    %v633 = vpop.f32.mrb[0].mxu0
    %v634 = vadd.f32 0.0, %v633
    %v635 = vpop.f32.mrb[0].mxu0
    %v636 = vadd.f32 0.0, %v635
    %637 = vdwg.mxu0
    %638 = vmatprep.subr.bf16.mxu0 0
    %639 = vmatpush1.bf16.xpose.msra.mxu0 %v445
    %640 = vmatprep.subr.bf16.mxu0 0
    %641 = vmatpush1.bf16.xpose.msra.mxu0 %v446
    %642 = vmatprep.subr.bf16.mxu0 0
    %643 = vmatpush1.bf16.xpose.msra.mxu0 %v447
    %644 = vmatprep.subr.bf16.mxu0 0
    %645 = vmatpush1.bf16.xpose.msra.mxu0 %v448
    %646 = vmatprep.subr.bf16.mxu0 0
    %647 = vmatpush1.bf16.xpose.msra.mxu0 %v449
    %648 = vmatprep.subr.bf16.mxu0 0
    %649 = vmatpush1.bf16.xpose.msra.mxu0 %v450
    %650 = vmatprep.subr.bf16.mxu0 0
    %651 = vmatpush1.bf16.xpose.msra.mxu0 %v451
    %652 = vmatprep.subr.bf16.mxu0 0
    %653 = vmatpush1.bf16.xpose.msra.mxu0 %v452
    %654 = vmatprep.subr.bf16.mxu0 0
    %655 = vmatpush1.bf16.xpose.msra.mxu0 %v453
    %656 = vmatprep.subr.bf16.mxu0 0
    %657 = vmatpush1.bf16.xpose.msra.mxu0 %v454
    %658 = vmatprep.subr.bf16.mxu0 0
    %659 = vmatpush1.bf16.xpose.msra.mxu0 %v455
    %660 = vmatprep.subr.bf16.mxu0 0
    %661 = vmatpush1.bf16.xpose.msra.mxu0 %v456
    %662 = vmatprep.subr.bf16.mxu0 0
    %663 = vmatpush1.bf16.xpose.msra.mxu0 %v457
    %664 = vmatprep.subr.bf16.mxu0 0
    %665 = vmatpush1.bf16.xpose.msra.mxu0 %v458
    %666 = vmatprep.subr.bf16.mxu0 0
    %667 = vmatpush1.bf16.xpose.msra.mxu0 %v459
    %668 = vmatprep.subr.bf16.mxu0 0
    %669 = vmatpush1.bf16.xpose.msra.mxu0 %v460
    %670 = vmatprep.mubr.bf16.mxu0 0
    %671 = vmatmul.mubr.bf16.gmra.mrb[0].mxu0 %v221
    %v672 = vpop.f32.mrb[0].mxu0
    %v673 = vadd.f32 0.0, %v672
    %v674 = vpop.f32.mrb[0].mxu0
    %v675 = vadd.f32 0.0, %v674
    %v676 = vpop.f32.mrb[0].mxu0
    %v677 = vadd.f32 0.0, %v676
    %v678 = vpop.f32.mrb[0].mxu0
    %v679 = vadd.f32 0.0, %v678
    %680 = vmatprep.mubr.bf16.mxu0 0
    %681 = vmatmul.mubr.bf16.gmra.mrb[0].mxu0 %v222
    %v682 = vpop.f32.mrb[0].mxu0
    %v683 = vadd.f32 0.0, %v682
    %v684 = vpop.f32.mrb[0].mxu0
    %v685 = vadd.f32 0.0, %v684
    %v686 = vpop.f32.mrb[0].mxu0
    %v687 = vadd.f32 0.0, %v686
    %v688 = vpop.f32.mrb[0].mxu0
    %v689 = vadd.f32 0.0, %v688
    %690 = vmatprep.mubr.bf16.mxu0 0
    %691 = vmatmul.mubr.bf16.gmra.mrb[0].mxu0 %v223
    %v692 = vpop.f32.mrb[0].mxu0
    %v693 = vadd.f32 0.0, %v692
    %v694 = vpop.f32.mrb[0].mxu0
    %v695 = vadd.f32 0.0, %v694
    %v696 = vpop.f32.mrb[0].mxu0
    %v697 = vadd.f32 0.0, %v696
    %v698 = vpop.f32.mrb[0].mxu0
    %v699 = vadd.f32 0.0, %v698
    %700 = vmatprep.mubr.bf16.mxu0 0
    %701 = vmatmul.mubr.bf16.gmra.mrb[0].mxu0 %v224
    %v702 = vpop.f32.mrb[0].mxu0
    %v703 = vadd.f32 0.0, %v702
    %v704 = vpop.f32.mrb[0].mxu0
    %v705 = vadd.f32 0.0, %v704
    %v706 = vpop.f32.mrb[0].mxu0
    %v707 = vadd.f32 0.0, %v706
    %v708 = vpop.f32.mrb[0].mxu0
    %v709 = vadd.f32 0.0, %v708
    %710 = vmatprep.mubr.bf16.mxu0 0
    %711 = vmatmul.mubr.bf16.gmra.mrb[0].mxu0 %v225
    %v712 = vpop.f32.mrb[0].mxu0
    %v713 = vadd.f32 0.0, %v712
    %v714 = vpop.f32.mrb[0].mxu0
    %v715 = vadd.f32 0.0, %v714
    %v716 = vpop.f32.mrb[0].mxu0
    %v717 = vadd.f32 0.0, %v716
    %v718 = vpop.f32.mrb[0].mxu0
    %v719 = vadd.f32 0.0, %v718
    %720 = vmatprep.mubr.bf16.mxu0 0
    %721 = vmatmul.mubr.bf16.gmra.mrb[0].mxu0 %v226
    %v722 = vpop.f32.mrb[0].mxu0
    %v723 = vadd.f32 0.0, %v722
    %v724 = vpop.f32.mrb[0].mxu0
    %v725 = vadd.f32 0.0, %v724
    %v726 = vpop.f32.mrb[0].mxu0
    %v727 = vadd.f32 0.0, %v726
    %v728 = vpop.f32.mrb[0].mxu0
    %v729 = vadd.f32 0.0, %v728
    %730 = vmatprep.mubr.bf16.mxu0 0
    %731 = vmatmul.mubr.bf16.gmra.mrb[0].mxu0 %v227
    %v732 = vpop.f32.mrb[0].mxu0
    %v733 = vadd.f32 0.0, %v732
    %v734 = vpop.f32.mrb[0].mxu0
    %v735 = vadd.f32 0.0, %v734
    %v736 = vpop.f32.mrb[0].mxu0
    %v737 = vadd.f32 0.0, %v736
    %v738 = vpop.f32.mrb[0].mxu0
    %v739 = vadd.f32 0.0, %v738
    %740 = vmatprep.mubr.bf16.mxu0 0
    %741 = vmatmul.mubr.bf16.gmra.mrb[0].mxu0 %v228
    %v742 = vpop.f32.mrb[0].mxu0
    %v743 = vadd.f32 0.0, %v742
    %v744 = vpop.f32.mrb[0].mxu0
    %v745 = vadd.f32 0.0, %v744
    %v746 = vpop.f32.mrb[0].mxu0
    %v747 = vadd.f32 0.0, %v746
    %v748 = vpop.f32.mrb[0].mxu0
    %v749 = vadd.f32 0.0, %v748
    %750 = vdwg.mxu0
    %751 = vmatprep.subr.bf16.mxu0 0
    %752 = vmatpush1.bf16.xpose.msra.mxu0 %v461
    %753 = vmatprep.subr.bf16.mxu0 0
    %754 = vmatpush1.bf16.xpose.msra.mxu0 %v462
    %755 = vmatprep.subr.bf16.mxu0 0
    %756 = vmatpush1.bf16.xpose.msra.mxu0 %v463
    %757 = vmatprep.subr.bf16.mxu0 0
    %758 = vmatpush1.bf16.xpose.msra.mxu0 %v464
    %759 = vmatprep.subr.bf16.mxu0 0
    %760 = vmatpush1.bf16.xpose.msra.mxu0 %v465
    %761 = vmatprep.subr.bf16.mxu0 0
    %762 = vmatpush1.bf16.xpose.msra.mxu0 %v466
    %763 = vmatprep.subr.bf16.mxu0 0
    %764 = vmatpush1.bf16.xpose.msra.mxu0 %v467
    %765 = vmatprep.subr.bf16.mxu0 0
    %766 = vmatpush1.bf16.xpose.msra.mxu0 %v468
    %767 = vmatprep.subr.bf16.mxu0 0
    %768 = vmatpush1.bf16.xpose.msra.mxu0 %v469
    %769 = vmatprep.subr.bf16.mxu0 0
    %770 = vmatpush1.bf16.xpose.msra.mxu0 %v470
    %771 = vmatprep.subr.bf16.mxu0 0
    %772 = vmatpush1.bf16.xpose.msra.mxu0 %v471
    %773 = vmatprep.subr.bf16.mxu0 0
    %774 = vmatpush1.bf16.xpose.msra.mxu0 %v472
    %775 = vmatprep.subr.bf16.mxu0 0
    %776 = vmatpush1.bf16.xpose.msra.mxu0 %v473
    %777 = vmatprep.subr.bf16.mxu0 0
    %778 = vmatpush1.bf16.xpose.msra.mxu0 %v474
    %779 = vmatprep.subr.bf16.mxu0 0
    %780 = vmatpush1.bf16.xpose.msra.mxu0 %v475
    %781 = vmatprep.subr.bf16.mxu0 0
    %782 = vmatpush1.bf16.xpose.msra.mxu0 %v476
    %783 = vmatprep.mubr.bf16.mxu0 0
    %784 = vmatmul.mubr.bf16.gmra.mrb[0].mxu0 %v221
    %v785 = vpop.f32.mrb[0].mxu0
    %v786 = vadd.f32 0.0, %v785
    %v787 = vpop.f32.mrb[0].mxu0
    %v788 = vadd.f32 0.0, %v787
    %v789 = vpop.f32.mrb[0].mxu0
    %v790 = vadd.f32 0.0, %v789
    %v791 = vpop.f32.mrb[0].mxu0
    %v792 = vadd.f32 0.0, %v791
    %793 = vmatprep.mubr.bf16.mxu0 0
    %794 = vmatmul.mubr.bf16.gmra.mrb[0].mxu0 %v222
    %v795 = vpop.f32.mrb[0].mxu0
    %v796 = vadd.f32 0.0, %v795
    %v797 = vpop.f32.mrb[0].mxu0
    %v798 = vadd.f32 0.0, %v797
    %v799 = vpop.f32.mrb[0].mxu0
    %v800 = vadd.f32 0.0, %v799
    %v801 = vpop.f32.mrb[0].mxu0
    %v802 = vadd.f32 0.0, %v801
    %803 = vmatprep.mubr.bf16.mxu0 0
    %804 = vmatmul.mubr.bf16.gmra.mrb[0].mxu0 %v223
    %v805 = vpop.f32.mrb[0].mxu0
    %v806 = vadd.f32 0.0, %v805
    %v807 = vpop.f32.mrb[0].mxu0
    %v808 = vadd.f32 0.0, %v807
    %v809 = vpop.f32.mrb[0].mxu0
    %v810 = vadd.f32 0.0, %v809
    %v811 = vpop.f32.mrb[0].mxu0
    %v812 = vadd.f32 0.0, %v811
    %813 = vmatprep.mubr.bf16.mxu0 0
    %814 = vmatmul.mubr.bf16.gmra.mrb[0].mxu0 %v224
    %v815 = vpop.f32.mrb[0].mxu0
    %v816 = vadd.f32 0.0, %v815
    %v817 = vpop.f32.mrb[0].mxu0
    %v818 = vadd.f32 0.0, %v817
    %v819 = vpop.f32.mrb[0].mxu0
    %v820 = vadd.f32 0.0, %v819
    %v821 = vpop.f32.mrb[0].mxu0
    %v822 = vadd.f32 0.0, %v821
    %823 = vmatprep.mubr.bf16.mxu0 0
    %824 = vmatmul.mubr.bf16.gmra.mrb[0].mxu0 %v225
    %v825 = vpop.f32.mrb[0].mxu0
    %v826 = vadd.f32 0.0, %v825
    %v827 = vpop.f32.mrb[0].mxu0
    %v828 = vadd.f32 0.0, %v827
    %v829 = vpop.f32.mrb[0].mxu0
    %v830 = vadd.f32 0.0, %v829
    %v831 = vpop.f32.mrb[0].mxu0
    %v832 = vadd.f32 0.0, %v831
    %833 = vmatprep.mubr.bf16.mxu0 0
    %834 = vmatmul.mubr.bf16.gmra.mrb[0].mxu0 %v226
    %v835 = vpop.f32.mrb[0].mxu0
    %v836 = vadd.f32 0.0, %v835
    %v837 = vpop.f32.mrb[0].mxu0
    %v838 = vadd.f32 0.0, %v837
    %v839 = vpop.f32.mrb[0].mxu0
    %v840 = vadd.f32 0.0, %v839
    %v841 = vpop.f32.mrb[0].mxu0
    %v842 = vadd.f32 0.0, %v841
    %843 = vmatprep.mubr.bf16.mxu0 0
    %844 = vmatmul.mubr.bf16.gmra.mrb[0].mxu0 %v227
    %v845 = vpop.f32.mrb[0].mxu0
    %v846 = vadd.f32 0.0, %v845
    %v847 = vpop.f32.mrb[0].mxu0
    %v848 = vadd.f32 0.0, %v847
    %v849 = vpop.f32.mrb[0].mxu0
    %v850 = vadd.f32 0.0, %v849
    %v851 = vpop.f32.mrb[0].mxu0
    %v852 = vadd.f32 0.0, %v851
    %853 = vmatprep.mubr.bf16.mxu0 0
    %854 = vmatmul.mubr.bf16.gmra.mrb[0].mxu0 %v228
    %v855 = vpop.f32.mrb[0].mxu0
    %v856 = vadd.f32 0.0, %v855
    %v857 = vpop.f32.mrb[0].mxu0
    %v858 = vadd.f32 0.0, %v857
    %v859 = vpop.f32.mrb[0].mxu0
    %v860 = vadd.f32 0.0, %v859
    %v861 = vpop.f32.mrb[0].mxu0
    %v862 = vadd.f32 0.0, %v861
    %863 = vdwg.mxu0
    %v864 = vxor.u32 %v560, 2147483648
    %v865 = vxor.u32 %v562, 2147483648
    %v866 = vxor.u32 %v673, 2147483648
    %v867 = vxor.u32 %v564, 2147483648
    %v868 = vxor.u32 %v566, 2147483648
    %v869 = vxor.u32 %v677, 2147483648
    %v870 = vxor.u32 %v570, 2147483648
    %v871 = vxor.u32 %v572, 2147483648
    %v872 = vxor.u32 %v683, 2147483648
    %v873 = vxor.u32 %v574, 2147483648
    %v874 = vxor.u32 %v576, 2147483648
    %v875 = vxor.u32 %v687, 2147483648
    %v876 = vxor.u32 %v580, 2147483648
    %v877 = vxor.u32 %v582, 2147483648
    %v878 = vxor.u32 %v693, 2147483648
    %v879 = vxor.u32 %v584, 2147483648
    %v880 = vxor.u32 %v586, 2147483648
    %v881 = vxor.u32 %v697, 2147483648
    %v882 = vxor.u32 %v590, 2147483648
    %v883 = vxor.u32 %v592, 2147483648
    %v884 = vxor.u32 %v703, 2147483648
    %v885 = vxor.u32 %v594, 2147483648
    %v886 = vxor.u32 %v596, 2147483648
    %v887 = vxor.u32 %v707, 2147483648
    %v888 = vxor.u32 %v600, 2147483648
    %v889 = vxor.u32 %v602, 2147483648
    %v890 = vxor.u32 %v713, 2147483648
    %v891 = vxor.u32 %v604, 2147483648
    %v892 = vxor.u32 %v606, 2147483648
    %v893 = vxor.u32 %v717, 2147483648
    %v894 = vxor.u32 %v610, 2147483648
    %v895 = vxor.u32 %v612, 2147483648
    %v896 = vxor.u32 %v723, 2147483648
    %v897 = vxor.u32 %v614, 2147483648
    %v898 = vxor.u32 %v616, 2147483648
    %v899 = vxor.u32 %v727, 2147483648
    %v900 = vxor.u32 %v620, 2147483648
    %v901 = vxor.u32 %v622, 2147483648
    %v902 = vxor.u32 %v733, 2147483648
    %v903 = vxor.u32 %v624, 2147483648
    %v904 = vxor.u32 %v626, 2147483648
    %v905 = vxor.u32 %v737, 2147483648
    %v906 = vxor.u32 %v630, 2147483648
    %v907 = vxor.u32 %v632, 2147483648
    %v908 = vxor.u32 %v743, 2147483648
    %v909 = vxor.u32 %v634, 2147483648
    %v910 = vxor.u32 %v636, 2147483648
    %v911 = vxor.u32 %v747, 2147483648
    %v912 = vmul.f32 %v864, 1.442695
    %v913 = vpow.pop %v912
    %v914 = vmul.f32 %v865, 1.442695
    %v915 = vpow.pop %v914
    %v916 = vmul.f32 %v866, 1.442695
    %v917 = vpow.pop %v916
    %v918 = vmul.f32 %v867, 1.442695
    %v919 = vpow.pop %v918
    %v920 = vmul.f32 %v868, 1.442695
    %v921 = vpow.pop %v920
    %v922 = vmul.f32 %v869, 1.442695
    %v923 = vpow.pop %v922
    %v924 = vmul.f32 %v870, 1.442695
    %v925 = vpow.pop %v924
    %v926 = vmul.f32 %v871, 1.442695
    %v927 = vpow.pop %v926
    %v928 = vmul.f32 %v872, 1.442695
    %v929 = vpow.pop %v928
    %v930 = vmul.f32 %v873, 1.442695
    %v931 = vpow.pop %v930
    %v932 = vmul.f32 %v874, 1.442695
    %v933 = vpow.pop %v932
    %v934 = vmul.f32 %v875, 1.442695
    %v935 = vpow.pop %v934
    %v936 = vmul.f32 %v876, 1.442695
    %v937 = vpow.pop %v936
    %v938 = vmul.f32 %v877, 1.442695
    %v939 = vpow.pop %v938
    %v940 = vmul.f32 %v878, 1.442695
    %v941 = vpow.pop %v940
    %v942 = vmul.f32 %v879, 1.442695
    %v943 = vpow.pop %v942
    %v944 = vmul.f32 %v880, 1.442695
    %v945 = vpow.pop %v944
    %v946 = vmul.f32 %v881, 1.442695
    %v947 = vpow.pop %v946
    %v948 = vmul.f32 %v882, 1.442695
    %v949 = vpow.pop %v948
    %v950 = vmul.f32 %v883, 1.442695
    %v951 = vpow.pop %v950
    %v952 = vmul.f32 %v884, 1.442695
    %v953 = vpow.pop %v952
    %v954 = vmul.f32 %v885, 1.442695
    %v955 = vpow.pop %v954
    %v956 = vmul.f32 %v886, 1.442695
    %v957 = vpow.pop %v956
    %v958 = vmul.f32 %v887, 1.442695
    %v959 = vpow.pop %v958
    %v960 = vmul.f32 %v888, 1.442695
    %v961 = vpow.pop %v960
    %v962 = vmul.f32 %v889, 1.442695
    %v963 = vpow.pop %v962
    %v964 = vmul.f32 %v890, 1.442695
    %v965 = vpow.pop %v964
    %v966 = vmul.f32 %v891, 1.442695
    %v967 = vpow.pop %v966
    %v968 = vmul.f32 %v892, 1.442695
    %v969 = vpow.pop %v968
    %v970 = vmul.f32 %v893, 1.442695
    %v971 = vpow.pop %v970
    %v972 = vmul.f32 %v894, 1.442695
    %v973 = vpow.pop %v972
    %v974 = vmul.f32 %v895, 1.442695
    %v975 = vpow.pop %v974
    %v976 = vmul.f32 %v896, 1.442695
    %v977 = vpow.pop %v976
    %v978 = vmul.f32 %v897, 1.442695
    %v979 = vpow.pop %v978
    %v980 = vmul.f32 %v898, 1.442695
    %v981 = vpow.pop %v980
    %v982 = vmul.f32 %v899, 1.442695
    %v983 = vpow.pop %v982
    %v984 = vmul.f32 %v900, 1.442695
    %v985 = vpow.pop %v984
    %v986 = vmul.f32 %v901, 1.442695
    %v987 = vpow.pop %v986
    %v988 = vmul.f32 %v902, 1.442695
    %v989 = vpow.pop %v988
    %v990 = vmul.f32 %v903, 1.442695
    %v991 = vpow.pop %v990
    %v992 = vmul.f32 %v904, 1.442695
    %v993 = vpow.pop %v992
    %v994 = vmul.f32 %v905, 1.442695
    %v995 = vpow.pop %v994
    %v996 = vmul.f32 %v906, 1.442695
    %v997 = vpow.pop %v996
    %v998 = vmul.f32 %v907, 1.442695
    %v999 = vpow.pop %v998
    %v1000 = vmul.f32 %v908, 1.442695
    %v1001 = vpow.pop %v1000
    %v1002 = vmul.f32 %v909, 1.442695
    %v1003 = vpow.pop %v1002
    %v1004 = vmul.f32 %v910, 1.442695
    %v1005 = vpow.pop %v1004
    %v1006 = vmul.f32 %v911, 1.442695
    %v1007 = vpow.pop %v1006
    %v1008 = vadd.f32 %v913, 1.0
    %v1009 = vadd.f32 %v915, 1.0
    %v1010 = vadd.f32 %v917, 1.0
    %v1011 = vadd.f32 %v919, 1.0
    %v1012 = vadd.f32 %v921, 1.0
    %v1013 = vadd.f32 %v923, 1.0
    %v1014 = vadd.f32 %v925, 1.0
    %v1015 = vadd.f32 %v927, 1.0
    %v1016 = vadd.f32 %v929, 1.0
    %v1017 = vadd.f32 %v931, 1.0
    %v1018 = vadd.f32 %v933, 1.0
    %v1019 = vadd.f32 %v935, 1.0
    %v1020 = vadd.f32 %v937, 1.0
    %v1021 = vadd.f32 %v939, 1.0
    %v1022 = vadd.f32 %v941, 1.0
    %v1023 = vadd.f32 %v943, 1.0
    %v1024 = vadd.f32 %v945, 1.0
    %v1025 = vadd.f32 %v947, 1.0
    %v1026 = vadd.f32 %v949, 1.0
    %v1027 = vadd.f32 %v951, 1.0
    %v1028 = vadd.f32 %v953, 1.0
    %v1029 = vadd.f32 %v955, 1.0
    %v1030 = vadd.f32 %v957, 1.0
    %v1031 = vadd.f32 %v959, 1.0
    %v1032 = vadd.f32 %v961, 1.0
    %v1033 = vadd.f32 %v963, 1.0
    %v1034 = vadd.f32 %v965, 1.0
    %v1035 = vadd.f32 %v967, 1.0
    %v1036 = vadd.f32 %v969, 1.0
    %v1037 = vadd.f32 %v971, 1.0
    %v1038 = vadd.f32 %v973, 1.0
    %v1039 = vadd.f32 %v975, 1.0
    %v1040 = vadd.f32 %v977, 1.0
    %v1041 = vadd.f32 %v979, 1.0
    %v1042 = vadd.f32 %v981, 1.0
    %v1043 = vadd.f32 %v983, 1.0
    %v1044 = vadd.f32 %v985, 1.0
    %v1045 = vadd.f32 %v987, 1.0
    %v1046 = vadd.f32 %v989, 1.0
    %v1047 = vadd.f32 %v991, 1.0
    %v1048 = vadd.f32 %v993, 1.0
    %v1049 = vadd.f32 %v995, 1.0
    %v1050 = vadd.f32 %v997, 1.0
    %v1051 = vadd.f32 %v999, 1.0
    %v1052 = vadd.f32 %v1001, 1.0
    %v1053 = vadd.f32 %v1003, 1.0
    %v1054 = vadd.f32 %v1005, 1.0
    %v1055 = vadd.f32 %v1007, 1.0
    %v1056 = vrcp.pop %v1008
    %v1057 = vmul.f32 1.0, %v1056
    %v1058 = vrcp.pop %v1009
    %v1059 = vmul.f32 1.0, %v1058
    %v1060 = vrcp.pop %v1010
    %v1061 = vmul.f32 1.0, %v1060
    %v1062 = vrcp.pop %v1011
    %v1063 = vmul.f32 1.0, %v1062
    %v1064 = vrcp.pop %v1012
    %v1065 = vmul.f32 1.0, %v1064
    %v1066 = vrcp.pop %v1013
    %v1067 = vmul.f32 1.0, %v1066
    %v1068 = vrcp.pop %v1014
    %v1069 = vmul.f32 1.0, %v1068
    %v1070 = vrcp.pop %v1015
    %v1071 = vmul.f32 1.0, %v1070
    %v1072 = vrcp.pop %v1016
    %v1073 = vmul.f32 1.0, %v1072
    %v1074 = vrcp.pop %v1017
    %v1075 = vmul.f32 1.0, %v1074
    %v1076 = vrcp.pop %v1018
    %v1077 = vmul.f32 1.0, %v1076
    %v1078 = vrcp.pop %v1019
    %v1079 = vmul.f32 1.0, %v1078
    %v1080 = vrcp.pop %v1020
    %v1081 = vmul.f32 1.0, %v1080
    %v1082 = vrcp.pop %v1021
    %v1083 = vmul.f32 1.0, %v1082
    %v1084 = vrcp.pop %v1022
    %v1085 = vmul.f32 1.0, %v1084
    %v1086 = vrcp.pop %v1023
    %v1087 = vmul.f32 1.0, %v1086
    %v1088 = vrcp.pop %v1024
    %v1089 = vmul.f32 1.0, %v1088
    %v1090 = vrcp.pop %v1025
    %v1091 = vmul.f32 1.0, %v1090
    %v1092 = vrcp.pop %v1026
    %v1093 = vmul.f32 1.0, %v1092
    %v1094 = vrcp.pop %v1027
    %v1095 = vmul.f32 1.0, %v1094
    %v1096 = vrcp.pop %v1028
    %v1097 = vmul.f32 1.0, %v1096
    %v1098 = vrcp.pop %v1029
    %v1099 = vmul.f32 1.0, %v1098
    %v1100 = vrcp.pop %v1030
    %v1101 = vmul.f32 1.0, %v1100
    %v1102 = vrcp.pop %v1031
    %v1103 = vmul.f32 1.0, %v1102
    %v1104 = vrcp.pop %v1032
    %v1105 = vmul.f32 1.0, %v1104
    %v1106 = vrcp.pop %v1033
    %v1107 = vmul.f32 1.0, %v1106
    %v1108 = vrcp.pop %v1034
    %v1109 = vmul.f32 1.0, %v1108
    %v1110 = vrcp.pop %v1035
    %v1111 = vmul.f32 1.0, %v1110
    %v1112 = vrcp.pop %v1036
    %v1113 = vmul.f32 1.0, %v1112
    %v1114 = vrcp.pop %v1037
    %v1115 = vmul.f32 1.0, %v1114
    %v1116 = vrcp.pop %v1038
    %v1117 = vmul.f32 1.0, %v1116
    %v1118 = vrcp.pop %v1039
    %v1119 = vmul.f32 1.0, %v1118
    %v1120 = vrcp.pop %v1040
    %v1121 = vmul.f32 1.0, %v1120
    %v1122 = vrcp.pop %v1041
    %v1123 = vmul.f32 1.0, %v1122
    %v1124 = vrcp.pop %v1042
    %v1125 = vmul.f32 1.0, %v1124
    %v1126 = vrcp.pop %v1043
    %v1127 = vmul.f32 1.0, %v1126
    %v1128 = vrcp.pop %v1044
    %v1129 = vmul.f32 1.0, %v1128
    %v1130 = vrcp.pop %v1045
    %v1131 = vmul.f32 1.0, %v1130
    %v1132 = vrcp.pop %v1046
    %v1133 = vmul.f32 1.0, %v1132
    %v1134 = vrcp.pop %v1047
    %v1135 = vmul.f32 1.0, %v1134
    %v1136 = vrcp.pop %v1048
    %v1137 = vmul.f32 1.0, %v1136
    %v1138 = vrcp.pop %v1049
    %v1139 = vmul.f32 1.0, %v1138
    %v1140 = vrcp.pop %v1050
    %v1141 = vmul.f32 1.0, %v1140
    %v1142 = vrcp.pop %v1051
    %v1143 = vmul.f32 1.0, %v1142
    %v1144 = vrcp.pop %v1052
    %v1145 = vmul.f32 1.0, %v1144
    %v1146 = vrcp.pop %v1053
    %v1147 = vmul.f32 1.0, %v1146
    %v1148 = vrcp.pop %v1054
    %v1149 = vmul.f32 1.0, %v1148
    %v1150 = vrcp.pop %v1055
    %v1151 = vmul.f32 1.0, %v1150
    %v1152 = vmul.f32 %v560, %v1057
    %v1153 = vmul.f32 %v562, %v1059
    %v1154 = vmul.f32 %v673, %v1061
    %v1155 = vmul.f32 %v564, %v1063
    %v1156 = vmul.f32 %v566, %v1065
    %v1157 = vmul.f32 %v677, %v1067
    %v1158 = vmul.f32 %v570, %v1069
    %v1159 = vmul.f32 %v572, %v1071
    %v1160 = vmul.f32 %v683, %v1073
    %v1161 = vmul.f32 %v574, %v1075
    %v1162 = vmul.f32 %v576, %v1077
    %v1163 = vmul.f32 %v687, %v1079
    %v1164 = vmul.f32 %v580, %v1081
    %v1165 = vmul.f32 %v582, %v1083
    %v1166 = vmul.f32 %v693, %v1085
    %v1167 = vmul.f32 %v584, %v1087
    %v1168 = vmul.f32 %v586, %v1089
    %v1169 = vmul.f32 %v697, %v1091
    %v1170 = vmul.f32 %v590, %v1093
    %v1171 = vmul.f32 %v592, %v1095
    %v1172 = vmul.f32 %v703, %v1097
    %v1173 = vmul.f32 %v594, %v1099
    %v1174 = vmul.f32 %v596, %v1101
    %v1175 = vmul.f32 %v707, %v1103
    %v1176 = vmul.f32 %v600, %v1105
    %v1177 = vmul.f32 %v602, %v1107
    %v1178 = vmul.f32 %v713, %v1109
    %v1179 = vmul.f32 %v604, %v1111
    %v1180 = vmul.f32 %v606, %v1113
    %v1181 = vmul.f32 %v717, %v1115
    %v1182 = vmul.f32 %v610, %v1117
    %v1183 = vmul.f32 %v612, %v1119
    %v1184 = vmul.f32 %v723, %v1121
    %v1185 = vmul.f32 %v614, %v1123
    %v1186 = vmul.f32 %v616, %v1125
    %v1187 = vmul.f32 %v727, %v1127
    %v1188 = vmul.f32 %v620, %v1129
    %v1189 = vmul.f32 %v622, %v1131
    %v1190 = vmul.f32 %v733, %v1133
    %v1191 = vmul.f32 %v624, %v1135
    %v1192 = vmul.f32 %v626, %v1137
    %v1193 = vmul.f32 %v737, %v1139
    %v1194 = vmul.f32 %v630, %v1141
    %v1195 = vmul.f32 %v632, %v1143
    %v1196 = vmul.f32 %v743, %v1145
    %v1197 = vmul.f32 %v634, %v1147
    %v1198 = vmul.f32 %v636, %v1149
    %v1199 = vmul.f32 %v747, %v1151
    %v1200 = vmul.f32 %v1152, %v675
    %v1201 = vmul.f32 %v1153, %v786
    %v1202 = vmul.f32 %v1154, %v788
    %v1203 = vmul.f32 %v1155, %v679
    %v1204 = vmul.f32 %v1156, %v790
    %v1205 = vmul.f32 %v1157, %v792
    %v1206 = vmul.f32 %v1158, %v685
    %v1207 = vmul.f32 %v1159, %v796
    %v1208 = vmul.f32 %v1160, %v798
    %v1209 = vmul.f32 %v1161, %v689
    %v1210 = vmul.f32 %v1162, %v800
    %v1211 = vmul.f32 %v1163, %v802
    %v1212 = vmul.f32 %v1164, %v695
    %v1213 = vmul.f32 %v1165, %v806
    %v1214 = vmul.f32 %v1166, %v808
    %v1215 = vmul.f32 %v1167, %v699
    %v1216 = vmul.f32 %v1168, %v810
    %v1217 = vmul.f32 %v1169, %v812
    %v1218 = vmul.f32 %v1170, %v705
    %v1219 = vmul.f32 %v1171, %v816
    %v1220 = vmul.f32 %v1172, %v818
    %v1221 = vmul.f32 %v1173, %v709
    %v1222 = vmul.f32 %v1174, %v820
    %v1223 = vmul.f32 %v1175, %v822
    %v1224 = vmul.f32 %v1176, %v715
    %v1225 = vmul.f32 %v1177, %v826
    %v1226 = vmul.f32 %v1178, %v828
    %v1227 = vmul.f32 %v1179, %v719
    %v1228 = vmul.f32 %v1180, %v830
    %v1229 = vmul.f32 %v1181, %v832
    %v1230 = vmul.f32 %v1182, %v725
    %v1231 = vmul.f32 %v1183, %v836
    %v1232 = vmul.f32 %v1184, %v838
    %v1233 = vmul.f32 %v1185, %v729
    %v1234 = vmul.f32 %v1186, %v840
    %v1235 = vmul.f32 %v1187, %v842
    %v1236 = vmul.f32 %v1188, %v735
    %v1237 = vmul.f32 %v1189, %v846
    %v1238 = vmul.f32 %v1190, %v848
    %v1239 = vmul.f32 %v1191, %v739
    %v1240 = vmul.f32 %v1192, %v850
    %v1241 = vmul.f32 %v1193, %v852
    %v1242 = vmul.f32 %v1194, %v745
    %v1243 = vmul.f32 %v1195, %v856
    %v1244 = vmul.f32 %v1196, %v858
    %v1245 = vmul.f32 %v1197, %v749
    %v1246 = vmul.f32 %v1198, %v860
    %v1247 = vmul.f32 %v1199, %v862
    %v1248 = vpack.c.bf16 %v1203, %v1200
    %v1249 = vpack.c.bf16 %v1204, %v1201
    %v1250 = vpack.c.bf16 %v1205, %v1202
    %v1251 = vpack.c.bf16 %v1209, %v1206
    %v1252 = vpack.c.bf16 %v1210, %v1207
    %v1253 = vpack.c.bf16 %v1211, %v1208
    %v1254 = vpack.c.bf16 %v1215, %v1212
    %v1255 = vpack.c.bf16 %v1216, %v1213
    %v1256 = vpack.c.bf16 %v1217, %v1214
    %v1257 = vpack.c.bf16 %v1221, %v1218
    %v1258 = vpack.c.bf16 %v1222, %v1219
    %v1259 = vpack.c.bf16 %v1223, %v1220
    %v1260 = vpack.c.bf16 %v1227, %v1224
    %v1261 = vpack.c.bf16 %v1228, %v1225
    %v1262 = vpack.c.bf16 %v1229, %v1226
    %v1263 = vpack.c.bf16 %v1233, %v1230
    %v1264 = vpack.c.bf16 %v1234, %v1231
    %v1265 = vpack.c.bf16 %v1235, %v1232
    %v1266 = vpack.c.bf16 %v1239, %v1236
    %v1267 = vpack.c.bf16 %v1240, %v1237
    %v1268 = vpack.c.bf16 %v1241, %v1238
    %v1269 = vpack.c.bf16 %v1245, %v1242
    %v1270 = vpack.c.bf16 %v1246, %v1243
    %v1271 = vpack.c.bf16 %v1247, %v1244
    %v1272 = vld [vmem:[#allocation2] sm:$0xff]
    %v1273 = vld [vmem:[#allocation2 + $0x8] sm:$0xff]
    %v1274 = vld [vmem:[#allocation2 + $0x10] sm:$0xff]
    %v1275 = vld [vmem:[#allocation2 + $0x18] sm:$0xff]
    %v1276 = vld [vmem:[#allocation2 + $0x20] sm:$0xff]
    %v1277 = vld [vmem:[#allocation2 + $0x28] sm:$0xff]
    %v1278 = vld [vmem:[#allocation2 + $0x30] sm:$0xff]
    %v1279 = vld [vmem:[#allocation2 + $0x38] sm:$0xff]
    %v1280 = vld [vmem:[#allocation2 + $0x40] sm:$0xff]
    %v1281 = vld [vmem:[#allocation2 + $0x48] sm:$0xff]
    %v1282 = vld [vmem:[#allocation2 + $0x50] sm:$0xff]
    %v1283 = vld [vmem:[#allocation2 + $0x58] sm:$0xff]
    %v1284 = vld [vmem:[#allocation2 + $0x60] sm:$0xff]
    %v1285 = vld [vmem:[#allocation2 + $0x68] sm:$0xff]
    %v1286 = vld [vmem:[#allocation2 + $0x70] sm:$0xff]
    %v1287 = vld [vmem:[#allocation2 + $0x78] sm:$0xff]
    %v1288 = vld [vmem:[#allocation8] sm:$0xf]
    %v1289 = vld [vmem:[#allocation8 + $0x4] sm:$0xf]
    %v1290 = vld [vmem:[#allocation8 + $0x8] sm:$0xf]
    %v1291 = vld [vmem:[#allocation8 + $0xc] sm:$0xf]
    %v1292 = vld [vmem:[#allocation8 + $0x10] sm:$0xf]
    %v1293 = vld [vmem:[#allocation8 + $0x14] sm:$0xf]
    %v1294 = vld [vmem:[#allocation8 + $0x18] sm:$0xf]
    %v1295 = vld [vmem:[#allocation8 + $0x1c] sm:$0xf]
    %v1296 = vld [vmem:[#allocation8 + $0x20] sm:$0xf]
    %v1297 = vld [vmem:[#allocation8 + $0x24] sm:$0xf]
    %v1298 = vld [vmem:[#allocation8 + $0x28] sm:$0xf]
    %v1299 = vld [vmem:[#allocation8 + $0x2c] sm:$0xf]
    %v1300 = vld [vmem:[#allocation8 + $0x30] sm:$0xf]
    %v1301 = vld [vmem:[#allocation8 + $0x34] sm:$0xf]
    %v1302 = vld [vmem:[#allocation8 + $0x38] sm:$0xf]
    %v1303 = vld [vmem:[#allocation8 + $0x3c] sm:$0xf]
    %v1304 = vld [vmem:[#allocation8 + $0x40] sm:$0xf]
    %v1305 = vld [vmem:[#allocation8 + $0x44] sm:$0xf]
    %v1306 = vld [vmem:[#allocation8 + $0x48] sm:$0xf]
    %v1307 = vld [vmem:[#allocation8 + $0x4c] sm:$0xf]
    %v1308 = vld [vmem:[#allocation8 + $0x50] sm:$0xf]
    %v1309 = vld [vmem:[#allocation8 + $0x54] sm:$0xf]
    %v1310 = vld [vmem:[#allocation8 + $0x58] sm:$0xf]
    %v1311 = vld [vmem:[#allocation8 + $0x5c] sm:$0xf]
    %v1312 = vld [vmem:[#allocation8 + $0x60] sm:$0xf]
    %v1313 = vld [vmem:[#allocation8 + $0x64] sm:$0xf]
    %v1314 = vld [vmem:[#allocation8 + $0x68] sm:$0xf]
    %v1315 = vld [vmem:[#allocation8 + $0x6c] sm:$0xf]
    %v1316 = vld [vmem:[#allocation8 + $0x70] sm:$0xf]
    %v1317 = vld [vmem:[#allocation8 + $0x74] sm:$0xf]
    %v1318 = vld [vmem:[#allocation8 + $0x78] sm:$0xf]
    %v1319 = vld [vmem:[#allocation8 + $0x7c] sm:$0xf]
    %v1320 = vld [vmem:[#allocation8 + $0x80] sm:$0xf]
    %v1321 = vld [vmem:[#allocation8 + $0x84] sm:$0xf]
    %v1322 = vld [vmem:[#allocation8 + $0x88] sm:$0xf]
    %v1323 = vld [vmem:[#allocation8 + $0x8c] sm:$0xf]
    %v1324 = vld [vmem:[#allocation8 + $0x90] sm:$0xf]
    %v1325 = vld [vmem:[#allocation8 + $0x94] sm:$0xf]
    %v1326 = vld [vmem:[#allocation8 + $0x98] sm:$0xf]
    %v1327 = vld [vmem:[#allocation8 + $0x9c] sm:$0xf]
    %v1328 = vld [vmem:[#allocation8 + $0xa0] sm:$0xf]
    %v1329 = vld [vmem:[#allocation8 + $0xa4] sm:$0xf]
    %v1330 = vld [vmem:[#allocation8 + $0xa8] sm:$0xf]
    %v1331 = vld [vmem:[#allocation8 + $0xac] sm:$0xf]
    %v1332 = vld [vmem:[#allocation8 + $0xb0] sm:$0xf]
    %v1333 = vld [vmem:[#allocation8 + $0xb4] sm:$0xf]
    %v1334 = vld [vmem:[#allocation8 + $0xb8] sm:$0xf]
    %v1335 = vld [vmem:[#allocation8 + $0xbc] sm:$0xf]
    %v1384 = vunpack.c.l.b16 %v1288
    %v1385 = vunpack.c.l.b16 %v1289
    %v1386 = vunpack.c.l.b16 %v1290
    %v1387 = vunpack.c.l.b16 %v1291
    %v1388 = vunpack.c.l.b16 %v1292
    %v1389 = vunpack.c.l.b16 %v1293
    %v1390 = vunpack.c.l.b16 %v1294
    %v1391 = vunpack.c.l.b16 %v1295
    %v1392 = vunpack.c.l.b16 %v1296
    %v1393 = vunpack.c.l.b16 %v1297
    %v1394 = vunpack.c.l.b16 %v1298
    %v1395 = vunpack.c.l.b16 %v1299
    %v1396 = vunpack.c.l.b16 %v1300
    %v1397 = vunpack.c.l.b16 %v1301
    %v1398 = vunpack.c.l.b16 %v1302
    %v1399 = vunpack.c.l.b16 %v1303
    %v1400 = vunpack.c.l.b16 %v1304
    %v1401 = vunpack.c.l.b16 %v1305
    %v1402 = vunpack.c.l.b16 %v1306
    %v1403 = vunpack.c.l.b16 %v1307
    %v1404 = vunpack.c.l.b16 %v1308
    %v1405 = vunpack.c.l.b16 %v1309
    %v1406 = vunpack.c.l.b16 %v1310
    %v1407 = vunpack.c.l.b16 %v1311
    %v1408 = vunpack.c.l.b16 %v1312
    %v1409 = vunpack.c.l.b16 %v1313
    %v1410 = vunpack.c.l.b16 %v1314
    %v1411 = vunpack.c.l.b16 %v1315
    %v1412 = vunpack.c.l.b16 %v1316
    %v1413 = vunpack.c.l.b16 %v1317
    %v1414 = vunpack.c.l.b16 %v1318
    %v1415 = vunpack.c.l.b16 %v1319
    %v1416 = vunpack.c.l.b16 %v1320
    %v1417 = vunpack.c.l.b16 %v1321
    %v1418 = vunpack.c.l.b16 %v1322
    %v1419 = vunpack.c.l.b16 %v1323
    %v1420 = vunpack.c.l.b16 %v1324
    %v1421 = vunpack.c.l.b16 %v1325
    %v1422 = vunpack.c.l.b16 %v1326
    %v1423 = vunpack.c.l.b16 %v1327
    %v1424 = vunpack.c.l.b16 %v1328
    %v1425 = vunpack.c.l.b16 %v1329
    %v1426 = vunpack.c.l.b16 %v1330
    %v1427 = vunpack.c.l.b16 %v1331
    %v1428 = vunpack.c.l.b16 %v1332
    %v1429 = vunpack.c.l.b16 %v1333
    %v1430 = vunpack.c.l.b16 %v1334
    %v1431 = vunpack.c.l.b16 %v1335
    %v1432 = vpack.c.b16 %v1385, %v1384
    %v1433 = vpack.c.b16 %v1387, %v1386
    %v1434 = vpack.c.b16 %v1389, %v1388
    %v1435 = vpack.c.b16 %v1391, %v1390
    %v1436 = vpack.c.b16 %v1393, %v1392
    %v1437 = vpack.c.b16 %v1395, %v1394
    %v1438 = vpack.c.b16 %v1397, %v1396
    %v1439 = vpack.c.b16 %v1399, %v1398
    %v1440 = vpack.c.b16 %v1401, %v1400
    %v1441 = vpack.c.b16 %v1403, %v1402
    %v1442 = vpack.c.b16 %v1405, %v1404
    %v1443 = vpack.c.b16 %v1407, %v1406
    %v1444 = vpack.c.b16 %v1409, %v1408
    %v1445 = vpack.c.b16 %v1411, %v1410
    %v1446 = vpack.c.b16 %v1413, %v1412
    %v1447 = vpack.c.b16 %v1415, %v1414
    %v1448 = vpack.c.b16 %v1417, %v1416
    %v1449 = vpack.c.b16 %v1419, %v1418
    %v1450 = vpack.c.b16 %v1421, %v1420
    %v1451 = vpack.c.b16 %v1423, %v1422
    %v1452 = vpack.c.b16 %v1425, %v1424
    %v1453 = vpack.c.b16 %v1427, %v1426
    %v1454 = vpack.c.b16 %v1429, %v1428
    %v1455 = vpack.c.b16 %v1431, %v1430
    %1480 = vmatprep.subr.bf16.mxu0 0
    %1481 = vmatpush1.bf16.msra.mxu0 %v1432
    %1482 = vmatprep.subr.bf16.mxu0 0
    %1483 = vmatpush1.bf16.msra.mxu0 %v1433
    %1484 = vmatprep.subr.bf16.mxu0 0
    %1485 = vmatpush1.bf16.msra.mxu0 %v1434
    %1486 = vmatprep.subr.bf16.mxu0 0
    %1487 = vmatpush1.bf16.msra.mxu0 %v1435
    %1488 = vmatprep.subr.bf16.mxu0 0
    %1489 = vmatpush1.bf16.msra.mxu0 %v1436
    %1490 = vmatprep.subr.bf16.mxu0 0
    %1491 = vmatpush1.bf16.msra.mxu0 %v1437
    %1492 = vmatprep.subr.bf16.mxu0 0
    %1493 = vmatpush1.bf16.msra.mxu0 %v1438
    %1494 = vmatprep.subr.bf16.mxu0 0
    %1495 = vmatpush1.bf16.msra.mxu0 %v1439
    %1496 = vmatprep.subr.bf16.mxu0 0
    %1497 = vmatpush1.bf16.msra.mxu0 %v1440
    %1498 = vmatprep.subr.bf16.mxu0 0
    %1499 = vmatpush1.bf16.msra.mxu0 %v1441
    %1500 = vmatprep.subr.bf16.mxu0 0
    %1501 = vmatpush1.bf16.msra.mxu0 %v1442
    %1502 = vmatprep.subr.bf16.mxu0 0
    %1503 = vmatpush1.bf16.msra.mxu0 %v1443
    %1504 = vmatprep.subr.bf16.mxu0 0
    %1505 = vmatpush1.bf16.msra.mxu0 %v1444
    %1506 = vmatprep.subr.bf16.mxu0 0
    %1507 = vmatpush1.bf16.msra.mxu0 %v1445
    %1508 = vmatprep.subr.bf16.mxu0 0
    %1509 = vmatpush1.bf16.msra.mxu0 %v1446
    %1510 = vmatprep.subr.bf16.mxu0 0
    %1511 = vmatpush1.bf16.msra.mxu0 %v1447
    %1512 = vmatprep.mubr.bf16.mxu0 %v1249
    %1513 = vmatmul.mubr.bf16.gmra.mrb[0].mxu0 %v1248
    %v1514 = vpop.f32.mrb[0].mxu0
    %v1515 = vadd.f32 0.0, %v1514
    %v1516 = vpop.f32.mrb[0].mxu0
    %v1517 = vpop.f32.mrb[0].mxu0
    %v1518 = vadd.f32 0.0, %v1517
    %v1519 = vpop.f32.mrb[0].mxu0
    %1520 = vmatprep.mubr.bf16.mxu0 %v1252
    %1521 = vmatmul.mubr.bf16.gmra.mrb[0].mxu0 %v1251
    %v1522 = vpop.f32.mrb[0].mxu0
    %v1523 = vadd.f32 0.0, %v1522
    %v1524 = vpop.f32.mrb[0].mxu0
    %v1525 = vpop.f32.mrb[0].mxu0
    %v1526 = vadd.f32 0.0, %v1525
    %v1527 = vpop.f32.mrb[0].mxu0
    %1528 = vmatprep.mubr.bf16.mxu0 %v1255
    %1529 = vmatmul.mubr.bf16.gmra.mrb[0].mxu0 %v1254
    %v1530 = vpop.f32.mrb[0].mxu0
    %v1531 = vadd.f32 0.0, %v1530
    %v1532 = vpop.f32.mrb[0].mxu0
    %v1533 = vpop.f32.mrb[0].mxu0
    %v1534 = vadd.f32 0.0, %v1533
    %v1535 = vpop.f32.mrb[0].mxu0
    %1536 = vmatprep.mubr.bf16.mxu0 %v1258
    %1537 = vmatmul.mubr.bf16.gmra.mrb[0].mxu0 %v1257
    %v1538 = vpop.f32.mrb[0].mxu0
    %v1539 = vadd.f32 0.0, %v1538
    %v1540 = vpop.f32.mrb[0].mxu0
    %v1541 = vpop.f32.mrb[0].mxu0
    %v1542 = vadd.f32 0.0, %v1541
    %v1543 = vpop.f32.mrb[0].mxu0
    %1544 = vmatprep.mubr.bf16.mxu0 %v1261
    %1545 = vmatmul.mubr.bf16.gmra.mrb[0].mxu0 %v1260
    %v1546 = vpop.f32.mrb[0].mxu0
    %v1547 = vadd.f32 0.0, %v1546
    %v1548 = vpop.f32.mrb[0].mxu0
    %v1549 = vpop.f32.mrb[0].mxu0
    %v1550 = vadd.f32 0.0, %v1549
    %v1551 = vpop.f32.mrb[0].mxu0
    %1552 = vmatprep.mubr.bf16.mxu0 %v1264
    %1553 = vmatmul.mubr.bf16.gmra.mrb[0].mxu0 %v1263
    %v1554 = vpop.f32.mrb[0].mxu0
    %v1555 = vadd.f32 0.0, %v1554
    %v1556 = vpop.f32.mrb[0].mxu0
    %v1557 = vpop.f32.mrb[0].mxu0
    %v1558 = vadd.f32 0.0, %v1557
    %v1559 = vpop.f32.mrb[0].mxu0
    %1560 = vmatprep.mubr.bf16.mxu0 %v1267
    %1561 = vmatmul.mubr.bf16.gmra.mrb[0].mxu0 %v1266
    %v1562 = vpop.f32.mrb[0].mxu0
    %v1563 = vadd.f32 0.0, %v1562
    %v1564 = vpop.f32.mrb[0].mxu0
    %v1565 = vpop.f32.mrb[0].mxu0
    %v1566 = vadd.f32 0.0, %v1565
    %v1567 = vpop.f32.mrb[0].mxu0
    %1568 = vmatprep.mubr.bf16.mxu0 %v1270
    %1569 = vmatmul.mubr.bf16.gmra.mrb[0].mxu0 %v1269
    %v1570 = vpop.f32.mrb[0].mxu0
    %v1571 = vadd.f32 0.0, %v1570
    %v1572 = vpop.f32.mrb[0].mxu0
    %v1573 = vpop.f32.mrb[0].mxu0
    %v1574 = vadd.f32 0.0, %v1573
    %v1575 = vpop.f32.mrb[0].mxu0
    %1576 = vdwg.mxu0
    %1577 = vmatprep.subr.bf16.mxu0 0
    %1578 = vmatpush1.bf16.msra.mxu0 %v1448
    %1579 = vmatprep.subr.bf16.mxu0 0
    %1580 = vmatpush1.bf16.msra.mxu0 %v1449
    %1581 = vmatprep.subr.bf16.mxu0 0
    %1582 = vmatpush1.bf16.msra.mxu0 %v1450
    %1583 = vmatprep.subr.bf16.mxu0 0
    %1584 = vmatpush1.bf16.msra.mxu0 %v1451
    %1585 = vmatprep.subr.bf16.mxu0 0
    %1586 = vmatpush1.bf16.msra.mxu0 %v1452
    %1587 = vmatprep.subr.bf16.mxu0 0
    %1588 = vmatpush1.bf16.msra.mxu0 %v1453
    %1589 = vmatprep.subr.bf16.mxu0 0
    %1590 = vmatpush1.bf16.msra.mxu0 %v1454
    %1591 = vmatprep.subr.bf16.mxu0 0
    %1592 = vmatpush1.bf16.msra.mxu0 %v1455
    %1593 = vmatprep.subr.bf16.mxu0 0
    %1594 = vmatpush1.bf16.msra.mxu0 0
    %1595 = vmatprep.subr.bf16.mxu0 0
    %1596 = vmatpush1.bf16.msra.mxu0 0
    %1597 = vmatprep.subr.bf16.mxu0 0
    %1598 = vmatpush1.bf16.msra.mxu0 0
    %1599 = vmatprep.subr.bf16.mxu0 0
    %1600 = vmatpush1.bf16.msra.mxu0 0
    %1601 = vmatprep.subr.bf16.mxu0 0
    %1602 = vmatpush1.bf16.msra.mxu0 0
    %1603 = vmatprep.subr.bf16.mxu0 0
    %1604 = vmatpush1.bf16.msra.mxu0 0
    %1605 = vmatprep.subr.bf16.mxu0 0
    %1606 = vmatpush1.bf16.msra.mxu0 0
    %1607 = vmatprep.subr.bf16.mxu0 0
    %1608 = vmatpush1.bf16.msra.mxu0 0
    %1609 = vmatprep.mubr.bf16.mxu0 0
    %1610 = vmatmul.mubr.bf16.gmra.mrb[0].mxu0 %v1250
    %v1611 = vpop.f32.mrb[0].mxu0
    %v1612 = vadd.f32 %v1515, %v1611
    %v1613 = vpop.f32.mrb[0].mxu0
    %v1614 = vpop.f32.mrb[0].mxu0
    %v1615 = vadd.f32 %v1518, %v1614
    %v1616 = vpop.f32.mrb[0].mxu0
    %1617 = vmatprep.mubr.bf16.mxu0 0
    %1618 = vmatmul.mubr.bf16.gmra.mrb[0].mxu0 %v1253
    %v1619 = vpop.f32.mrb[0].mxu0
    %v1620 = vadd.f32 %v1523, %v1619
    %v1621 = vpop.f32.mrb[0].mxu0
    %v1622 = vpop.f32.mrb[0].mxu0
    %v1623 = vadd.f32 %v1526, %v1622
    %v1624 = vpop.f32.mrb[0].mxu0
    %1625 = vmatprep.mubr.bf16.mxu0 0
    %1626 = vmatmul.mubr.bf16.gmra.mrb[0].mxu0 %v1256
    %v1627 = vpop.f32.mrb[0].mxu0
    %v1628 = vadd.f32 %v1531, %v1627
    %v1629 = vpop.f32.mrb[0].mxu0
    %v1630 = vpop.f32.mrb[0].mxu0
    %v1631 = vadd.f32 %v1534, %v1630
    %v1632 = vpop.f32.mrb[0].mxu0
    %1633 = vmatprep.mubr.bf16.mxu0 0
    %1634 = vmatmul.mubr.bf16.gmra.mrb[0].mxu0 %v1259
    %v1635 = vpop.f32.mrb[0].mxu0
    %v1636 = vadd.f32 %v1539, %v1635
    %v1637 = vpop.f32.mrb[0].mxu0
    %v1638 = vpop.f32.mrb[0].mxu0
    %v1639 = vadd.f32 %v1542, %v1638
    %v1640 = vpop.f32.mrb[0].mxu0
    %1641 = vmatprep.mubr.bf16.mxu0 0
    %1642 = vmatmul.mubr.bf16.gmra.mrb[0].mxu0 %v1262
    %v1643 = vpop.f32.mrb[0].mxu0
    %v1644 = vadd.f32 %v1547, %v1643
    %v1645 = vpop.f32.mrb[0].mxu0
    %v1646 = vpop.f32.mrb[0].mxu0
    %v1647 = vadd.f32 %v1550, %v1646
    %v1648 = vpop.f32.mrb[0].mxu0
    %1649 = vmatprep.mubr.bf16.mxu0 0
    %1650 = vmatmul.mubr.bf16.gmra.mrb[0].mxu0 %v1265
    %v1651 = vpop.f32.mrb[0].mxu0
    %v1652 = vadd.f32 %v1555, %v1651
    %v1653 = vpop.f32.mrb[0].mxu0
    %v1654 = vpop.f32.mrb[0].mxu0
    %v1655 = vadd.f32 %v1558, %v1654
    %v1656 = vpop.f32.mrb[0].mxu0
    %1657 = vmatprep.mubr.bf16.mxu0 0
    %1658 = vmatmul.mubr.bf16.gmra.mrb[0].mxu0 %v1268
    %v1659 = vpop.f32.mrb[0].mxu0
    %v1660 = vadd.f32 %v1563, %v1659
    %v1661 = vpop.f32.mrb[0].mxu0
    %v1662 = vpop.f32.mrb[0].mxu0
    %v1663 = vadd.f32 %v1566, %v1662
    %v1664 = vpop.f32.mrb[0].mxu0
    %1665 = vmatprep.mubr.bf16.mxu0 0
    %1666 = vmatmul.mubr.bf16.gmra.mrb[0].mxu0 %v1271
    %v1667 = vpop.f32.mrb[0].mxu0
    %v1668 = vadd.f32 %v1571, %v1667
    %v1669 = vpop.f32.mrb[0].mxu0
    %v1670 = vpop.f32.mrb[0].mxu0
    %v1671 = vadd.f32 %v1574, %v1670
    %v1672 = vpop.f32.mrb[0].mxu0
    %1673 = vdwg.mxu0
    %v1674 = vadd.f32 %v1272, %v1612
    %v1675 = vadd.f32 %v1273, %v1615
    %v1676 = vadd.f32 %v1274, %v1620
    %v1677 = vadd.f32 %v1275, %v1623
    %v1678 = vadd.f32 %v1276, %v1628
    %v1679 = vadd.f32 %v1277, %v1631
    %v1680 = vadd.f32 %v1278, %v1636
    %v1681 = vadd.f32 %v1279, %v1639
    %v1682 = vadd.f32 %v1280, %v1644
    %v1683 = vadd.f32 %v1281, %v1647
    %v1684 = vadd.f32 %v1282, %v1652
    %v1685 = vadd.f32 %v1283, %v1655
    %v1686 = vadd.f32 %v1284, %v1660
    %v1687 = vadd.f32 %v1285, %v1663
    %v1688 = vadd.f32 %v1286, %v1668
    %v1689 = vadd.f32 %v1287, %v1671
    %1690 = vst [vmem:[#allocation2] sm:$0xff] %v1674
    %1691 = vst [vmem:[#allocation2 + $0x8] sm:$0xff] %v1675
    %1692 = vst [vmem:[#allocation2 + $0x10] sm:$0xff] %v1676
    %1693 = vst [vmem:[#allocation2 + $0x18] sm:$0xff] %v1677
    %1694 = vst [vmem:[#allocation2 + $0x20] sm:$0xff] %v1678
    %1695 = vst [vmem:[#allocation2 + $0x28] sm:$0xff] %v1679
    %1696 = vst [vmem:[#allocation2 + $0x30] sm:$0xff] %v1680
    %1697 = vst [vmem:[#allocation2 + $0x38] sm:$0xff] %v1681
    %1698 = vst [vmem:[#allocation2 + $0x40] sm:$0xff] %v1682
    %1699 = vst [vmem:[#allocation2 + $0x48] sm:$0xff] %v1683
    %1700 = vst [vmem:[#allocation2 + $0x50] sm:$0xff] %v1684
    %1701 = vst [vmem:[#allocation2 + $0x58] sm:$0xff] %v1685
    %1702 = vst [vmem:[#allocation2 + $0x60] sm:$0xff] %v1686
    %1703 = vst [vmem:[#allocation2 + $0x68] sm:$0xff] %v1687
    %1704 = vst [vmem:[#allocation2 + $0x70] sm:$0xff] %v1688
    %1705 = vst [vmem:[#allocation2 + $0x78] sm:$0xff] %v1689
    // Predicated region
    $region30: #{tpu_custom_call.1} parent=1 // pred_check
      %p1706 = pneg %p57
    $region31: #{tpu_custom_call.1} parent=1 // pred_check_branch
      %1708 = sbr.rel (%p1706) target = $region33
    $region32: #{tpu_custom_call.1} parent=1 // pred_region
      %v1709 = vld [vmem:[#allocation2] sm:$0xff]
      %v1710 = vld [vmem:[#allocation2 + $0x8] sm:$0xff]
      %v1711 = vld [vmem:[#allocation2 + $0x10] sm:$0xff]
      %v1712 = vld [vmem:[#allocation2 + $0x18] sm:$0xff]
      %v1713 = vld [vmem:[#allocation2 + $0x20] sm:$0xff]
      %v1714 = vld [vmem:[#allocation2 + $0x28] sm:$0xff]
      %v1715 = vld [vmem:[#allocation2 + $0x30] sm:$0xff]
      %v1716 = vld [vmem:[#allocation2 + $0x38] sm:$0xff]
      %v1717 = vld [vmem:[#allocation2 + $0x40] sm:$0xff]
      %v1718 = vld [vmem:[#allocation2 + $0x48] sm:$0xff]
      %v1719 = vld [vmem:[#allocation2 + $0x50] sm:$0xff]
      %v1720 = vld [vmem:[#allocation2 + $0x58] sm:$0xff]
      %v1721 = vld [vmem:[#allocation2 + $0x60] sm:$0xff]
      %v1722 = vld [vmem:[#allocation2 + $0x68] sm:$0xff]
      %v1723 = vld [vmem:[#allocation2 + $0x70] sm:$0xff]
      %v1724 = vld [vmem:[#allocation2 + $0x78] sm:$0xff]
      %1725 = vst [vmem:[#allocation9] sm:$0xff] %v1709
      %1726 = vst [vmem:[#allocation9 + $0x8] sm:$0xff] %v1710
      %1727 = vst [vmem:[#allocation9 + $0x10] sm:$0xff] %v1711
      %1728 = vst [vmem:[#allocation9 + $0x18] sm:$0xff] %v1712
      %1729 = vst [vmem:[#allocation9 + $0x20] sm:$0xff] %v1713
      %1730 = vst [vmem:[#allocation9 + $0x28] sm:$0xff] %v1714
      %1731 = vst [vmem:[#allocation9 + $0x30] sm:$0xff] %v1715
      %1732 = vst [vmem:[#allocation9 + $0x38] sm:$0xff] %v1716
      %1733 = vst [vmem:[#allocation9 + $0x40] sm:$0xff] %v1717
      %1734 = vst [vmem:[#allocation9 + $0x48] sm:$0xff] %v1718
      %1735 = vst [vmem:[#allocation9 + $0x50] sm:$0xff] %v1719
      %1736 = vst [vmem:[#allocation9 + $0x58] sm:$0xff] %v1720
      %1737 = vst [vmem:[#allocation9 + $0x60] sm:$0xff] %v1721
      %1738 = vst [vmem:[#allocation9 + $0x68] sm:$0xff] %v1722
      %1739 = vst [vmem:[#allocation9 + $0x70] sm:$0xff] %v1723
      %1740 = vst [vmem:[#allocation9 + $0x78] sm:$0xff] %v1724
    $region33: #{tpu_custom_call.1} parent=1 // pred_fallthru
      _
    // Predicated region
    $region34: #{tpu_custom_call.1} parent=1 // pred_check
      _
    $region35: #{tpu_custom_call.1} parent=1 // pred_check_branch
      %1742 = sbr.rel (0) target = $region37
    $region36: #{tpu_custom_call.1} parent=1 // pred_region
      %s1744 = ssub.s32 2048, 2048
      %1745 = vsyncadd [#allocation5], %s1744
      %s1746 = sshll.u32 [#allocation9], 4
      %s1747 = int_to_ptr.vmem [resolvable:$true] %s1746
      %1752 = dma.vmem_to_hbm [thread:$0]  %s1747, 2048, %s3, [#allocation5], 128, 128, 8
    $region37: #{tpu_custom_call.1} parent=1 // pred_fallthru
      _
    // Predicated region
    $region38: #{tpu_custom_call.1} parent=1 // pred_check
      _
    $region39: #{tpu_custom_call.1} parent=1 // pred_check_branch
      %1754 = sbr.rel (0) target = $region41
    $region40: #{tpu_custom_call.1} parent=1 // pred_region
      %1755 = dma.done [#allocation5], 2048
    $region41: #{tpu_custom_call.1} parent=1 // pred_fallthru
      _
    %1756 = vsyncpa [#allocation4], 1
    %1757 = vsyncpa [#allocation7], 1
    %1758 = vsyncpa [#allocation5], 1

</llo_original>
